<compile_context>
chip_gen: v6e
topology: v6e:2x2x1
jax: 0.10.0
libtpu: 0.0.40
codegen_flags: <defaults>
</compile_context>

<pallas_src>
import functools
import math

import jax
import jax.numpy as jnp
from jax import lax
from jax.experimental import pallas as pl
from jax.experimental.pallas import tpu as pltpu

# ---------------------------------------------------------------------------
# model sizes (small, consistent with the module's forward)
# ---------------------------------------------------------------------------
B = 2           # batch
L = 8           # query length
S = 8           # key/value length
D = 32          # d_model
H = 4           # n_heads
E = D // H      # head dim (d_keys = d_values = d_model // n_heads)
SCALE = 1.0 / math.sqrt(E)
MASK_BIAS = -1e30


# ---------------------------------------------------------------------------
# Pallas kernel: AttentionLayer forward for `nb` batches per invocation
# ---------------------------------------------------------------------------
def _attention_layer_kernel(x_ref, bias_ref, tau_ref, wqkv_ref, bqkv_ref,
                            wo_ref, bo_ref, out_ref, *,
                            nb, rows_per_batch, k_row_off, v_row_off):
    # x_ref   : (nb*rows_per_batch, D)  per-batch rows [q (L) | k (S) | v (S)]
    #           (self-attention: rows_per_batch == L and q/k/v share the rows)
    # bias_ref: (nb, L, S)   = scale * (delta + mask * -1e30)
    # tau_ref : (nb, 1, S)   = tau * scale, lane-broadcast
    # wqkv_ref: (D, 3D), bqkv_ref: (1, 3D)   packed q/k/v projection (x @ W convention)
    # wo_ref  : (D, D),  bo_ref : (1, D)     output projection (x @ W convention)
    # out_ref : (nb*L, D)

    # Single fused projection matmul for q, k and v of every batch in this block.
    xp = jnp.dot(x_ref[...], wqkv_ref[...],
                 preferred_element_type=jnp.float32) + bqkv_ref[...]

    per_batch = []
    for bb in range(nb):                                    # static unroll
        base = bb * rows_per_batch
        qp = xp[base:base + L, 0:D]                                       # (L, D)
        kp = xp[base + k_row_off:base + k_row_off + S, D:2 * D]           # (S, D)
        vp = xp[base + v_row_off:base + v_row_off + S, 2 * D:3 * D]       # (S, D)
        bias_b = bias_ref[bb]                               # (L, S), already scaled
        tau_b = tau_ref[bb]                                 # (1, S), tau*scale

        heads = []
        for h in range(H):                                  # static unroll, in registers
            qh = qp[:, h * E:(h + 1) * E]
            kh = kp[:, h * E:(h + 1) * E]
            vh = vp[:, h * E:(h + 1) * E]
            # contraction over the last dim of BOTH operands -> no explicit k^T (no XLU
            # transpose competing with the MXU pushes on the vector-extended slot).
            s = lax.dot_general(qh, kh, (((1,), (1,)), ((), ())),
                                preferred_element_type=jnp.float32)       # (L, S)
            s = s * tau_b + bias_b                          # scale already folded in
            m = jnp.max(s, axis=-1, keepdims=True)
            p = jnp.exp(s - m)
            denom = jnp.sum(p, axis=-1, keepdims=True)
            # approx=False keeps the softmax normalization exact (cost is negligible at
            # (L,1); flip to approx=True for the EUP vrcp if tolerance allows).
            a = p * pl.reciprocal(denom, approx=False)
            heads.append(jnp.dot(a, vh, preferred_element_type=jnp.float32))
        # Lane-axis concat of 4x(L,E) pieces; writing heads straight into a VMEM scratch
        # is a possible further tweak but needs a bundle dump to justify.
        per_batch.append(jnp.concatenate(heads, axis=-1))   # (L, D)

    attn_out = per_batch[0] if nb == 1 else jnp.concatenate(per_batch, axis=0)
    out_ref[...] = (jnp.dot(attn_out, wo_ref[...],
                            preferred_element_type=jnp.float32) + bo_ref[...])


# ---------------------------------------------------------------------------
# pallas_call builders (gridless for v5e/v6e, batch-parallel grid for v7x)
# ---------------------------------------------------------------------------
@functools.lru_cache(maxsize=None)
def _build_call(self_attn: bool, use_grid: bool):
    rows_per_batch = L if self_attn else (L + 2 * S)
    k_row_off = 0 if self_attn else L
    v_row_off = 0 if self_attn else L + S
    nb = 1 if use_grid else B
    kernel = functools.partial(
        _attention_layer_kernel, nb=nb, rows_per_batch=rows_per_batch,
        k_row_off=k_row_off, v_row_off=v_row_off)

    vmem = pltpu.MemorySpace.VMEM
    out_shape = jax.ShapeDtypeStruct((B * L, D), jnp.float32)

    if not use_grid:
        # ONE gridless invocation: whole (B, L) problem in a single kernel call
        # (no per-step pipeline overhead on single-TensorCore v5e/v6e).
        return pl.pallas_call(
            kernel,
            out_shape=out_shape,
            in_specs=[
                pl.BlockSpec(memory_space=vmem),   # x rows      (B*rows_per_batch, D)
                pl.BlockSpec(memory_space=vmem),   # bias        (B, L, S)
                pl.BlockSpec(memory_space=vmem),   # tau*scale   (B, 1, S)
                pl.BlockSpec(memory_space=vmem),   # Wqkv        (D, 3D)
                pl.BlockSpec(memory_space=vmem),   # bqkv        (1, 3D)
                pl.BlockSpec(memory_space=vmem),   # Wo          (D, D)
                pl.BlockSpec(memory_space=vmem),   # bo          (1, D)
            ],
            out_specs=pl.BlockSpec(memory_space=vmem),
        )

    # v7x: shard the batch across the two TensorCores with a parallel grid axis.
    # Parameter blocks use constant index maps -> not re-fetched between steps.
    return pl.pallas_call(
        kernel,
        out_shape=out_shape,
        grid=(B,),
        in_specs=[
            pl.BlockSpec((rows_per_batch, D), lambda b: (b, 0)),   # x rows (per batch)
            pl.BlockSpec((1, L, S), lambda b: (b, 0, 0)),          # bias   (per batch)
            pl.BlockSpec((1, 1, S), lambda b: (b, 0, 0)),          # tau    (per batch)
            pl.BlockSpec((D, 3 * D), lambda b: (0, 0)),            # Wqkv
            pl.BlockSpec((1, 3 * D), lambda b: (0, 0)),            # bqkv
            pl.BlockSpec((D, D), lambda b: (0, 0)),                # Wo
            pl.BlockSpec((1, D), lambda b: (0, 0)),                # bo
        ],
        out_specs=pl.BlockSpec((L, D), lambda b: (b, 0)),
        compiler_params=pltpu.CompilerParams(
            dimension_semantics=("parallel",)),
    )


def _default_use_grid() -> bool:
    """Batch-parallel grid only pays off where there are 2 TensorCores (v7x)."""
    try:
        kind = jax.devices()[0].device_kind.lower()
    except Exception:
        return False
    return ("v7" in kind) or ("7x" in kind)


# ---------------------------------------------------------------------------
# wrapper
# ---------------------------------------------------------------------------
def pack_params(wq, bq, wk, bk, wv, bv, wo, bo):
    """Pack nn.Linear parameters given in torch (out_features, in_features) layout.

    Returns (Wqkv, bqkv, Wo, bo) in x @ W convention, ready for the kernel.
    """
    f32 = jnp.float32
    wqkv = jnp.concatenate([wq.T, wk.T, wv.T], axis=1).astype(f32)     # (D, 3D)
    bqkv = jnp.concatenate([bq, bk, bv]).reshape(1, 3 * D).astype(f32)
    return wqkv, bqkv, wo.T.astype(f32), bo.reshape(1, D).astype(f32)


@functools.partial(jax.jit, static_argnames=("self_attn", "use_grid"))
def _forward_jit(q, k, v, att_mask, tau, delta, wqkv, bqkv, wo, bo,
                 *, self_attn, use_grid):
    # Merge mask + delta into ONE pre-scaled additive bias (one DMA descriptor, no
    # in-kernel (B,L,S) mul), and fold the softmax scale into both bias and tau.
    bias = jnp.float32(SCALE) * (
        delta.reshape(B, 1, S).astype(jnp.float32)
        + att_mask.astype(jnp.float32) * jnp.float32(MASK_BIAS))          # (B, L, S)
    tau_scaled = jnp.broadcast_to(
        tau.reshape(B, 1, 1).astype(jnp.float32) * jnp.float32(SCALE),
        (B, 1, S))                                                        # (B, 1, S)

    if self_attn:
        x_rows = q.reshape(B * L, D).astype(jnp.float32)       # one activation DMA
    else:
        # per-batch row stack [q | k | v] -> still a single projection matmul
        x_rows = jnp.concatenate([q, k, v], axis=1).reshape(
            B * (L + 2 * S), D).astype(jnp.float32)

    call = _build_call(self_attn, use_grid)
    out2d = call(x_rows, bias, tau_scaled, wqkv, bqkv, wo, bo)
    return out2d.reshape(B, L, D)


def attention_layer_forward(q, k, v, att_mask, tau, delta, params, use_grid=None):
    """Mirrors AttentionLayer.forward with DSAttention (eval mode).

    params = (Wqkv, bqkv, Wo, bo) from pack_params().
    Returns (out, None): DSAttention's default output_attention=False path.
    """
    # TODO(synk): output_attention=True (returning the (B,H,L,S) softmax map) is not
    #             implemented; the module's default returns None.
    # TODO(synk): nn.Dropout is identity (eval mode), not modeled.
    if use_grid is None:
        use_grid = _default_use_grid()
    self_attn = (q is k) and (k is v)
    out = _forward_jit(q, k, v, att_mask, tau, delta, *params,
                       self_attn=self_attn, use_grid=use_grid)
    return out, None


# ---------------------------------------------------------------------------
# pure-JAX reference (mirrors the PyTorch module exactly, f32, HIGHEST matmuls)
# ---------------------------------------------------------------------------
def _reference_forward(q, k, v, att_mask, tau, delta,
                       wq, bq, wk, bk, wv, bv, wo, bo):
    hi = jax.lax.Precision.HIGHEST
    qp = jnp.einsum("bld,ed->ble", q, wq, precision=hi) + bq
    kp = jnp.einsum("bsd,ed->bse", k, wk, precision=hi) + bk
    vp = jnp.einsum("bsd,ed->bse", v, wv, precision=hi) + bv
    qh = qp.reshape(B, L, H, E)
    kh = kp.reshape(B, S, H, E)
    vh = vp.reshape(B, S, H, E)
    tau_b = tau.reshape(B, 1, 1, 1)
    delta_b = delta.reshape(B, 1, 1, S)
    scores = jnp.einsum("blhe,bshe->bhls", qh, kh, precision=hi) * tau_b + delta_b
    scores = jnp.where(att_mask[:, None, :, :].astype(bool), -jnp.inf, scores)
    A = jax.nn.softmax(SCALE * scores, axis=-1)
    out_h = jnp.einsum("bhls,bshd->blhd", A, vh, precision=hi)
    return jnp.einsum("bld,ed->ble", out_h.reshape(B, L, D), wo, precision=hi) + bo


# ---------------------------------------------------------------------------
# demo / smoke test
# ---------------------------------------------------------------------------
if __name__ == "__main__":
    key = jax.random.PRNGKey(0)
    keys = jax.random.split(key, 11)

    # self-attention input (NStransformer encoder usage) and a cross-attention triple
    x = jax.random.normal(keys[0], (B, L, D), jnp.float32)
    q2 = jax.random.normal(keys[1], (B, L, D), jnp.float32)
    k2 = jax.random.normal(keys[2], (B, S, D), jnp.float32)
    v2 = jax.random.normal(keys[3], (B, S, D), jnp.float32)

    # causal 0/1 mask (1.0 = masked); every row keeps >= 1 unmasked position
    att_mask = jnp.broadcast_to(
        jnp.triu(jnp.ones((L, S), jnp.float32), k=1), (B, L, S))
    tau = jnp.exp(0.1 * jax.random.normal(keys[4], (B, 1), jnp.float32))
    delta = 0.1 * jax.random.normal(keys[5], (B, S), jnp.float32)

    # nn.Linear-style parameters: (out_features, in_features) weights + biases
    wq = 0.05 * jax.random.normal(keys[6], (D, D), jnp.float32)
    wk = 0.05 * jax.random.normal(keys[7], (D, D), jnp.float32)
    wv = 0.05 * jax.random.normal(keys[8], (D, D), jnp.float32)
    wo = 0.05 * jax.random.normal(keys[9], (D, D), jnp.float32)
    bq, bk, bv, bo = 0.02 * jax.random.normal(keys[10], (4, D), jnp.float32)

    params = pack_params(wq, bq, wk, bk, wv, bv, wo, bo)
    raw = (wq, bq, wk, bk, wv, bv, wo, bo)
    use_grid_default = _default_use_grid()

    # 1) self-attention path (q is k is v): fused single-input projection
    out_self, attn = attention_layer_forward(x, x, x, att_mask, tau, delta, params)
    out_self = jax.block_until_ready(out_self)
    ref_self = _reference_forward(x, x, x, att_mask, tau, delta, *raw)
    assert attn is None
    assert out_self.shape == (B, L, D)
    assert bool(jnp.all(jnp.isfinite(out_self)))
    assert bool(jnp.allclose(out_self, ref_self, rtol=3e-3, atol=3e-3))

    # 2) general cross-attention path with distinct q / k / v
    out_cross, _ = attention_layer_forward(q2, k2, v2, att_mask, tau, delta, params)
    out_cross = jax.block_until_ready(out_cross)
    ref_cross = _reference_forward(q2, k2, v2, att_mask, tau, delta, *raw)
    assert bool(jnp.all(jnp.isfinite(out_cross)))
    assert bool(jnp.allclose(out_cross, ref_cross, rtol=3e-3, atol=3e-3))

    # 3) exercise the non-default grid configuration too (v7x <-> v5e/v6e shape)
    out_alt, _ = attention_layer_forward(x, x, x, att_mask, tau, delta, params,
                                         use_grid=not use_grid_default)
    out_alt = jax.block_until_ready(out_alt)
    assert bool(jnp.allclose(out_alt, ref_self, rtol=3e-3, atol=3e-3))

    print("KERNEL_OK")
</pallas_src>

<mosaic_0001>
module attributes {stable_mosaic.version = 11 : i64} {
  func.func @_attention_layer_kernel(%arg0: memref<16x32xf32, #tpu.memory_space<vmem>>, %arg1: memref<2x8x8xf32, #tpu.memory_space<vmem>>, %arg2: memref<2x1x8xf32, #tpu.memory_space<vmem>>, %arg3: memref<32x96xf32, #tpu.memory_space<vmem>>, %arg4: memref<1x96xf32, #tpu.memory_space<vmem>>, %arg5: memref<32x32xf32, #tpu.memory_space<vmem>>, %arg6: memref<1x32xf32, #tpu.memory_space<vmem>>, %arg7: memref<16x32xf32, #tpu.memory_space<vmem>>) attributes {dimension_semantics = [], scalar_prefetch = 0 : i64, scratch_operands = 0 : i64, tpu.core_type = #tpu.core_type<tc>} {
    %c0 = arith.constant 0 : index
    %c0_0 = arith.constant 0 : index
    %0 = vector.load %arg0[%c0, %c0_0] : memref<16x32xf32, #tpu.memory_space<vmem>>, vector<16x32xf32>
    %c0_1 = arith.constant 0 : index
    %c0_2 = arith.constant 0 : index
    %1 = vector.load %arg3[%c0_1, %c0_2] : memref<32x96xf32, #tpu.memory_space<vmem>>, vector<32x96xf32>
    %cst = arith.constant dense<0.000000e+00> : vector<16x96xf32>
    %2 = tpu.matmul %0, %1, %cst {dimension_numbers = #tpu.dot_dimension_numbers<[1], [0], [0], [1], [0, 0, 1, 1], [], []>} : vector<16x32xf32>, vector<32x96xf32>, vector<16x96xf32> -> vector<16x96xf32>
    %c0_3 = arith.constant 0 : index
    %c0_4 = arith.constant 0 : index
    %3 = vector.load %arg4[%c0_3, %c0_4] : memref<1x96xf32, #tpu.memory_space<vmem>>, vector<1x96xf32>
    %4 = vector.broadcast %3 : vector<1x96xf32> to vector<16x96xf32>
    %5 = arith.addf %2, %4 : vector<16x96xf32>
    %6 = vector.extract_strided_slice %5 {offsets = [0, 0], sizes = [8, 32], strides = [1, 1]} : vector<16x96xf32> to vector<8x32xf32>
    %7 = vector.extract_strided_slice %5 {offsets = [0, 32], sizes = [8, 32], strides = [1, 1]} : vector<16x96xf32> to vector<8x32xf32>
    %8 = vector.extract_strided_slice %5 {offsets = [0, 64], sizes = [8, 32], strides = [1, 1]} : vector<16x96xf32> to vector<8x32xf32>
    %c0_5 = arith.constant 0 : index
    %c0_6 = arith.constant 0 : index
    %c0_7 = arith.constant 0 : index
    %9 = vector.load %arg1[%c0_5, %c0_6, %c0_7] : memref<2x8x8xf32, #tpu.memory_space<vmem>>, vector<1x8x8xf32>
    %10 = vector.shape_cast %9 : vector<1x8x8xf32> to vector<8x8xf32>
    %c0_8 = arith.constant 0 : index
    %c0_9 = arith.constant 0 : index
    %c0_10 = arith.constant 0 : index
    %11 = vector.load %arg2[%c0_8, %c0_9, %c0_10] : memref<2x1x8xf32, #tpu.memory_space<vmem>>, vector<1x1x8xf32>
    %12 = vector.shape_cast %11 : vector<1x1x8xf32> to vector<1x8xf32>
    %13 = vector.extract_strided_slice %6 {offsets = [0, 0], sizes = [8, 8], strides = [1, 1]} : vector<8x32xf32> to vector<8x8xf32>
    %14 = vector.extract_strided_slice %7 {offsets = [0, 0], sizes = [8, 8], strides = [1, 1]} : vector<8x32xf32> to vector<8x8xf32>
    %15 = vector.extract_strided_slice %8 {offsets = [0, 0], sizes = [8, 8], strides = [1, 1]} : vector<8x32xf32> to vector<8x8xf32>
    %cst_11 = arith.constant dense<0.000000e+00> : vector<8x8xf32>
    %16 = tpu.matmul %13, %14, %cst_11 {dimension_numbers = #tpu.dot_dimension_numbers<[1], [1], [0], [0], [0, 0, 1, 0], [], []>} : vector<8x8xf32>, vector<8x8xf32>, vector<8x8xf32> -> vector<8x8xf32>
    %17 = vector.broadcast %12 : vector<1x8xf32> to vector<8x8xf32>
    %18 = arith.mulf %16, %17 : vector<8x8xf32>
    %19 = arith.addf %18, %10 : vector<8x8xf32>
    %cst_12 = arith.constant dense<0xFF800000> : vector<8xf32>
    %20 = vector.multi_reduction <maximumf>, %19, %cst_12 [1] : vector<8x8xf32> to vector<8xf32>
    %21 = vector.shape_cast %20 : vector<8xf32> to vector<8x1xf32>
    %22 = vector.broadcast %21 : vector<8x1xf32> to vector<8x8xf32>
    %23 = arith.subf %19, %22 : vector<8x8xf32>
    %24 = math.exp %23 : vector<8x8xf32>
    %cst_13 = arith.constant dense<0.000000e+00> : vector<8xf32>
    %25 = vector.multi_reduction <add>, %24, %cst_13 [1] : vector<8x8xf32> to vector<8xf32>
    %26 = vector.shape_cast %25 : vector<8xf32> to vector<8x1xf32>
    %27 = tpu.reciprocal %26 : vector<8x1xf32> -> vector<8x1xf32>
    %28 = vector.broadcast %27 : vector<8x1xf32> to vector<8x8xf32>
    %29 = arith.mulf %24, %28 : vector<8x8xf32>
    %cst_14 = arith.constant dense<0.000000e+00> : vector<8x8xf32>
    %30 = tpu.matmul %29, %15, %cst_14 {dimension_numbers = #tpu.dot_dimension_numbers<[1], [0], [0], [1], [0, 0, 1, 1], [], []>} : vector<8x8xf32>, vector<8x8xf32>, vector<8x8xf32> -> vector<8x8xf32>
    %31 = vector.extract_strided_slice %6 {offsets = [0, 8], sizes = [8, 8], strides = [1, 1]} : vector<8x32xf32> to vector<8x8xf32>
    %32 = vector.extract_strided_slice %7 {offsets = [0, 8], sizes = [8, 8], strides = [1, 1]} : vector<8x32xf32> to vector<8x8xf32>
    %33 = vector.extract_strided_slice %8 {offsets = [0, 8], sizes = [8, 8], strides = [1, 1]} : vector<8x32xf32> to vector<8x8xf32>
    %cst_15 = arith.constant dense<0.000000e+00> : vector<8x8xf32>
    %34 = tpu.matmul %31, %32, %cst_15 {dimension_numbers = #tpu.dot_dimension_numbers<[1], [1], [0], [0], [0, 0, 1, 0], [], []>} : vector<8x8xf32>, vector<8x8xf32>, vector<8x8xf32> -> vector<8x8xf32>
    %35 = vector.broadcast %12 : vector<1x8xf32> to vector<8x8xf32>
    %36 = arith.mulf %34, %35 : vector<8x8xf32>
    %37 = arith.addf %36, %10 : vector<8x8xf32>
    %cst_16 = arith.constant dense<0xFF800000> : vector<8xf32>
    %38 = vector.multi_reduction <maximumf>, %37, %cst_16 [1] : vector<8x8xf32> to vector<8xf32>
    %39 = vector.shape_cast %38 : vector<8xf32> to vector<8x1xf32>
    %40 = vector.broadcast %39 : vector<8x1xf32> to vector<8x8xf32>
    %41 = arith.subf %37, %40 : vector<8x8xf32>
    %42 = math.exp %41 : vector<8x8xf32>
    %cst_17 = arith.constant dense<0.000000e+00> : vector<8xf32>
    %43 = vector.multi_reduction <add>, %42, %cst_17 [1] : vector<8x8xf32> to vector<8xf32>
    %44 = vector.shape_cast %43 : vector<8xf32> to vector<8x1xf32>
    %45 = tpu.reciprocal %44 : vector<8x1xf32> -> vector<8x1xf32>
    %46 = vector.broadcast %45 : vector<8x1xf32> to vector<8x8xf32>
    %47 = arith.mulf %42, %46 : vector<8x8xf32>
    %cst_18 = arith.constant dense<0.000000e+00> : vector<8x8xf32>
    %48 = tpu.matmul %47, %33, %cst_18 {dimension_numbers = #tpu.dot_dimension_numbers<[1], [0], [0], [1], [0, 0, 1, 1], [], []>} : vector<8x8xf32>, vector<8x8xf32>, vector<8x8xf32> -> vector<8x8xf32>
    %49 = vector.extract_strided_slice %6 {offsets = [0, 16], sizes = [8, 8], strides = [1, 1]} : vector<8x32xf32> to vector<8x8xf32>
    %50 = vector.extract_strided_slice %7 {offsets = [0, 16], sizes = [8, 8], strides = [1, 1]} : vector<8x32xf32> to vector<8x8xf32>
    %51 = vector.extract_strided_slice %8 {offsets = [0, 16], sizes = [8, 8], strides = [1, 1]} : vector<8x32xf32> to vector<8x8xf32>
    %cst_19 = arith.constant dense<0.000000e+00> : vector<8x8xf32>
    %52 = tpu.matmul %49, %50, %cst_19 {dimension_numbers = #tpu.dot_dimension_numbers<[1], [1], [0], [0], [0, 0, 1, 0], [], []>} : vector<8x8xf32>, vector<8x8xf32>, vector<8x8xf32> -> vector<8x8xf32>
    %53 = vector.broadcast %12 : vector<1x8xf32> to vector<8x8xf32>
    %54 = arith.mulf %52, %53 : vector<8x8xf32>
    %55 = arith.addf %54, %10 : vector<8x8xf32>
    %cst_20 = arith.constant dense<0xFF800000> : vector<8xf32>
    %56 = vector.multi_reduction <maximumf>, %55, %cst_20 [1] : vector<8x8xf32> to vector<8xf32>
    %57 = vector.shape_cast %56 : vector<8xf32> to vector<8x1xf32>
    %58 = vector.broadcast %57 : vector<8x1xf32> to vector<8x8xf32>
    %59 = arith.subf %55, %58 : vector<8x8xf32>
    %60 = math.exp %59 : vector<8x8xf32>
    %cst_21 = arith.constant dense<0.000000e+00> : vector<8xf32>
    %61 = vector.multi_reduction <add>, %60, %cst_21 [1] : vector<8x8xf32> to vector<8xf32>
    %62 = vector.shape_cast %61 : vector<8xf32> to vector<8x1xf32>
    %63 = tpu.reciprocal %62 : vector<8x1xf32> -> vector<8x1xf32>
    %64 = vector.broadcast %63 : vector<8x1xf32> to vector<8x8xf32>
    %65 = arith.mulf %60, %64 : vector<8x8xf32>
    %cst_22 = arith.constant dense<0.000000e+00> : vector<8x8xf32>
    %66 = tpu.matmul %65, %51, %cst_22 {dimension_numbers = #tpu.dot_dimension_numbers<[1], [0], [0], [1], [0, 0, 1, 1], [], []>} : vector<8x8xf32>, vector<8x8xf32>, vector<8x8xf32> -> vector<8x8xf32>
    %67 = vector.extract_strided_slice %6 {offsets = [0, 24], sizes = [8, 8], strides = [1, 1]} : vector<8x32xf32> to vector<8x8xf32>
    %68 = vector.extract_strided_slice %7 {offsets = [0, 24], sizes = [8, 8], strides = [1, 1]} : vector<8x32xf32> to vector<8x8xf32>
    %69 = vector.extract_strided_slice %8 {offsets = [0, 24], sizes = [8, 8], strides = [1, 1]} : vector<8x32xf32> to vector<8x8xf32>
    %cst_23 = arith.constant dense<0.000000e+00> : vector<8x8xf32>
    %70 = tpu.matmul %67, %68, %cst_23 {dimension_numbers = #tpu.dot_dimension_numbers<[1], [1], [0], [0], [0, 0, 1, 0], [], []>} : vector<8x8xf32>, vector<8x8xf32>, vector<8x8xf32> -> vector<8x8xf32>
    %71 = vector.broadcast %12 : vector<1x8xf32> to vector<8x8xf32>
    %72 = arith.mulf %70, %71 : vector<8x8xf32>
    %73 = arith.addf %72, %10 : vector<8x8xf32>
    %cst_24 = arith.constant dense<0xFF800000> : vector<8xf32>
    %74 = vector.multi_reduction <maximumf>, %73, %cst_24 [1] : vector<8x8xf32> to vector<8xf32>
    %75 = vector.shape_cast %74 : vector<8xf32> to vector<8x1xf32>
    %76 = vector.broadcast %75 : vector<8x1xf32> to vector<8x8xf32>
    %77 = arith.subf %73, %76 : vector<8x8xf32>
    %78 = math.exp %77 : vector<8x8xf32>
    %cst_25 = arith.constant dense<0.000000e+00> : vector<8xf32>
    %79 = vector.multi_reduction <add>, %78, %cst_25 [1] : vector<8x8xf32> to vector<8xf32>
    %80 = vector.shape_cast %79 : vector<8xf32> to vector<8x1xf32>
    %81 = tpu.reciprocal %80 : vector<8x1xf32> -> vector<8x1xf32>
    %82 = vector.broadcast %81 : vector<8x1xf32> to vector<8x8xf32>
    %83 = arith.mulf %78, %82 : vector<8x8xf32>
    %cst_26 = arith.constant dense<0.000000e+00> : vector<8x8xf32>
    %84 = tpu.matmul %83, %69, %cst_26 {dimension_numbers = #tpu.dot_dimension_numbers<[1], [0], [0], [1], [0, 0, 1, 1], [], []>} : vector<8x8xf32>, vector<8x8xf32>, vector<8x8xf32> -> vector<8x8xf32>
    %85 = tpu.concatenate %30, %48, %66, %84 in 1 : vector<8x8xf32>, vector<8x8xf32>, vector<8x8xf32>, vector<8x8xf32> -> vector<8x32xf32>
    %86 = vector.extract_strided_slice %5 {offsets = [8, 0], sizes = [8, 32], strides = [1, 1]} : vector<16x96xf32> to vector<8x32xf32>
    %87 = vector.extract_strided_slice %5 {offsets = [8, 32], sizes = [8, 32], strides = [1, 1]} : vector<16x96xf32> to vector<8x32xf32>
    %88 = vector.extract_strided_slice %5 {offsets = [8, 64], sizes = [8, 32], strides = [1, 1]} : vector<16x96xf32> to vector<8x32xf32>
    %c1 = arith.constant 1 : index
    %c0_27 = arith.constant 0 : index
    %c0_28 = arith.constant 0 : index
    %89 = vector.load %arg1[%c1, %c0_27, %c0_28] : memref<2x8x8xf32, #tpu.memory_space<vmem>>, vector<1x8x8xf32>
    %90 = vector.shape_cast %89 : vector<1x8x8xf32> to vector<8x8xf32>
    %c1_29 = arith.constant 1 : index
    %c0_30 = arith.constant 0 : index
    %c0_31 = arith.constant 0 : index
    %91 = vector.load %arg2[%c1_29, %c0_30, %c0_31] : memref<2x1x8xf32, #tpu.memory_space<vmem>>, vector<1x1x8xf32>
    %92 = vector.shape_cast %91 : vector<1x1x8xf32> to vector<1x8xf32>
    %93 = vector.extract_strided_slice %86 {offsets = [0, 0], sizes = [8, 8], strides = [1, 1]} : vector<8x32xf32> to vector<8x8xf32>
    %94 = vector.extract_strided_slice %87 {offsets = [0, 0], sizes = [8, 8], strides = [1, 1]} : vector<8x32xf32> to vector<8x8xf32>
    %95 = vector.extract_strided_slice %88 {offsets = [0, 0], sizes = [8, 8], strides = [1, 1]} : vector<8x32xf32> to vector<8x8xf32>
    %cst_32 = arith.constant dense<0.000000e+00> : vector<8x8xf32>
    %96 = tpu.matmul %93, %94, %cst_32 {dimension_numbers = #tpu.dot_dimension_numbers<[1], [1], [0], [0], [0, 0, 1, 0], [], []>} : vector<8x8xf32>, vector<8x8xf32>, vector<8x8xf32> -> vector<8x8xf32>
    %97 = vector.broadcast %92 : vector<1x8xf32> to vector<8x8xf32>
    %98 = arith.mulf %96, %97 : vector<8x8xf32>
    %99 = arith.addf %98, %90 : vector<8x8xf32>
    %cst_33 = arith.constant dense<0xFF800000> : vector<8xf32>
    %100 = vector.multi_reduction <maximumf>, %99, %cst_33 [1] : vector<8x8xf32> to vector<8xf32>
    %101 = vector.shape_cast %100 : vector<8xf32> to vector<8x1xf32>
    %102 = vector.broadcast %101 : vector<8x1xf32> to vector<8x8xf32>
    %103 = arith.subf %99, %102 : vector<8x8xf32>
    %104 = math.exp %103 : vector<8x8xf32>
    %cst_34 = arith.constant dense<0.000000e+00> : vector<8xf32>
    %105 = vector.multi_reduction <add>, %104, %cst_34 [1] : vector<8x8xf32> to vector<8xf32>
    %106 = vector.shape_cast %105 : vector<8xf32> to vector<8x1xf32>
    %107 = tpu.reciprocal %106 : vector<8x1xf32> -> vector<8x1xf32>
    %108 = vector.broadcast %107 : vector<8x1xf32> to vector<8x8xf32>
    %109 = arith.mulf %104, %108 : vector<8x8xf32>
    %cst_35 = arith.constant dense<0.000000e+00> : vector<8x8xf32>
    %110 = tpu.matmul %109, %95, %cst_35 {dimension_numbers = #tpu.dot_dimension_numbers<[1], [0], [0], [1], [0, 0, 1, 1], [], []>} : vector<8x8xf32>, vector<8x8xf32>, vector<8x8xf32> -> vector<8x8xf32>
    %111 = vector.extract_strided_slice %86 {offsets = [0, 8], sizes = [8, 8], strides = [1, 1]} : vector<8x32xf32> to vector<8x8xf32>
    %112 = vector.extract_strided_slice %87 {offsets = [0, 8], sizes = [8, 8], strides = [1, 1]} : vector<8x32xf32> to vector<8x8xf32>
    %113 = vector.extract_strided_slice %88 {offsets = [0, 8], sizes = [8, 8], strides = [1, 1]} : vector<8x32xf32> to vector<8x8xf32>
    %cst_36 = arith.constant dense<0.000000e+00> : vector<8x8xf32>
    %114 = tpu.matmul %111, %112, %cst_36 {dimension_numbers = #tpu.dot_dimension_numbers<[1], [1], [0], [0], [0, 0, 1, 0], [], []>} : vector<8x8xf32>, vector<8x8xf32>, vector<8x8xf32> -> vector<8x8xf32>
    %115 = vector.broadcast %92 : vector<1x8xf32> to vector<8x8xf32>
    %116 = arith.mulf %114, %115 : vector<8x8xf32>
    %117 = arith.addf %116, %90 : vector<8x8xf32>
    %cst_37 = arith.constant dense<0xFF800000> : vector<8xf32>
    %118 = vector.multi_reduction <maximumf>, %117, %cst_37 [1] : vector<8x8xf32> to vector<8xf32>
    %119 = vector.shape_cast %118 : vector<8xf32> to vector<8x1xf32>
    %120 = vector.broadcast %119 : vector<8x1xf32> to vector<8x8xf32>
    %121 = arith.subf %117, %120 : vector<8x8xf32>
    %122 = math.exp %121 : vector<8x8xf32>
    %cst_38 = arith.constant dense<0.000000e+00> : vector<8xf32>
    %123 = vector.multi_reduction <add>, %122, %cst_38 [1] : vector<8x8xf32> to vector<8xf32>
    %124 = vector.shape_cast %123 : vector<8xf32> to vector<8x1xf32>
    %125 = tpu.reciprocal %124 : vector<8x1xf32> -> vector<8x1xf32>
    %126 = vector.broadcast %125 : vector<8x1xf32> to vector<8x8xf32>
    %127 = arith.mulf %122, %126 : vector<8x8xf32>
    %cst_39 = arith.constant dense<0.000000e+00> : vector<8x8xf32>
    %128 = tpu.matmul %127, %113, %cst_39 {dimension_numbers = #tpu.dot_dimension_numbers<[1], [0], [0], [1], [0, 0, 1, 1], [], []>} : vector<8x8xf32>, vector<8x8xf32>, vector<8x8xf32> -> vector<8x8xf32>
    %129 = vector.extract_strided_slice %86 {offsets = [0, 16], sizes = [8, 8], strides = [1, 1]} : vector<8x32xf32> to vector<8x8xf32>
    %130 = vector.extract_strided_slice %87 {offsets = [0, 16], sizes = [8, 8], strides = [1, 1]} : vector<8x32xf32> to vector<8x8xf32>
    %131 = vector.extract_strided_slice %88 {offsets = [0, 16], sizes = [8, 8], strides = [1, 1]} : vector<8x32xf32> to vector<8x8xf32>
    %cst_40 = arith.constant dense<0.000000e+00> : vector<8x8xf32>
    %132 = tpu.matmul %129, %130, %cst_40 {dimension_numbers = #tpu.dot_dimension_numbers<[1], [1], [0], [0], [0, 0, 1, 0], [], []>} : vector<8x8xf32>, vector<8x8xf32>, vector<8x8xf32> -> vector<8x8xf32>
    %133 = vector.broadcast %92 : vector<1x8xf32> to vector<8x8xf32>
    %134 = arith.mulf %132, %133 : vector<8x8xf32>
    %135 = arith.addf %134, %90 : vector<8x8xf32>
    %cst_41 = arith.constant dense<0xFF800000> : vector<8xf32>
    %136 = vector.multi_reduction <maximumf>, %135, %cst_41 [1] : vector<8x8xf32> to vector<8xf32>
    %137 = vector.shape_cast %136 : vector<8xf32> to vector<8x1xf32>
    %138 = vector.broadcast %137 : vector<8x1xf32> to vector<8x8xf32>
    %139 = arith.subf %135, %138 : vector<8x8xf32>
    %140 = math.exp %139 : vector<8x8xf32>
    %cst_42 = arith.constant dense<0.000000e+00> : vector<8xf32>
    %141 = vector.multi_reduction <add>, %140, %cst_42 [1] : vector<8x8xf32> to vector<8xf32>
    %142 = vector.shape_cast %141 : vector<8xf32> to vector<8x1xf32>
    %143 = tpu.reciprocal %142 : vector<8x1xf32> -> vector<8x1xf32>
    %144 = vector.broadcast %143 : vector<8x1xf32> to vector<8x8xf32>
    %145 = arith.mulf %140, %144 : vector<8x8xf32>
    %cst_43 = arith.constant dense<0.000000e+00> : vector<8x8xf32>
    %146 = tpu.matmul %145, %131, %cst_43 {dimension_numbers = #tpu.dot_dimension_numbers<[1], [0], [0], [1], [0, 0, 1, 1], [], []>} : vector<8x8xf32>, vector<8x8xf32>, vector<8x8xf32> -> vector<8x8xf32>
    %147 = vector.extract_strided_slice %86 {offsets = [0, 24], sizes = [8, 8], strides = [1, 1]} : vector<8x32xf32> to vector<8x8xf32>
    %148 = vector.extract_strided_slice %87 {offsets = [0, 24], sizes = [8, 8], strides = [1, 1]} : vector<8x32xf32> to vector<8x8xf32>
    %149 = vector.extract_strided_slice %88 {offsets = [0, 24], sizes = [8, 8], strides = [1, 1]} : vector<8x32xf32> to vector<8x8xf32>
    %cst_44 = arith.constant dense<0.000000e+00> : vector<8x8xf32>
    %150 = tpu.matmul %147, %148, %cst_44 {dimension_numbers = #tpu.dot_dimension_numbers<[1], [1], [0], [0], [0, 0, 1, 0], [], []>} : vector<8x8xf32>, vector<8x8xf32>, vector<8x8xf32> -> vector<8x8xf32>
    %151 = vector.broadcast %92 : vector<1x8xf32> to vector<8x8xf32>
    %152 = arith.mulf %150, %151 : vector<8x8xf32>
    %153 = arith.addf %152, %90 : vector<8x8xf32>
    %cst_45 = arith.constant dense<0xFF800000> : vector<8xf32>
    %154 = vector.multi_reduction <maximumf>, %153, %cst_45 [1] : vector<8x8xf32> to vector<8xf32>
    %155 = vector.shape_cast %154 : vector<8xf32> to vector<8x1xf32>
    %156 = vector.broadcast %155 : vector<8x1xf32> to vector<8x8xf32>
    %157 = arith.subf %153, %156 : vector<8x8xf32>
    %158 = math.exp %157 : vector<8x8xf32>
    %cst_46 = arith.constant dense<0.000000e+00> : vector<8xf32>
    %159 = vector.multi_reduction <add>, %158, %cst_46 [1] : vector<8x8xf32> to vector<8xf32>
    %160 = vector.shape_cast %159 : vector<8xf32> to vector<8x1xf32>
    %161 = tpu.reciprocal %160 : vector<8x1xf32> -> vector<8x1xf32>
    %162 = vector.broadcast %161 : vector<8x1xf32> to vector<8x8xf32>
    %163 = arith.mulf %158, %162 : vector<8x8xf32>
    %cst_47 = arith.constant dense<0.000000e+00> : vector<8x8xf32>
    %164 = tpu.matmul %163, %149, %cst_47 {dimension_numbers = #tpu.dot_dimension_numbers<[1], [0], [0], [1], [0, 0, 1, 1], [], []>} : vector<8x8xf32>, vector<8x8xf32>, vector<8x8xf32> -> vector<8x8xf32>
    %165 = tpu.concatenate %110, %128, %146, %164 in 1 : vector<8x8xf32>, vector<8x8xf32>, vector<8x8xf32>, vector<8x8xf32> -> vector<8x32xf32>
    %166 = tpu.concatenate %85, %165 in 0 : vector<8x32xf32>, vector<8x32xf32> -> vector<16x32xf32>
    %c0_48 = arith.constant 0 : index
    %c0_49 = arith.constant 0 : index
    %167 = vector.load %arg5[%c0_48, %c0_49] : memref<32x32xf32, #tpu.memory_space<vmem>>, vector<32x32xf32>
    %cst_50 = arith.constant dense<0.000000e+00> : vector<16x32xf32>
    %168 = tpu.matmul %166, %167, %cst_50 {dimension_numbers = #tpu.dot_dimension_numbers<[1], [0], [0], [1], [0, 0, 1, 1], [], []>} : vector<16x32xf32>, vector<32x32xf32>, vector<16x32xf32> -> vector<16x32xf32>
    %c0_51 = arith.constant 0 : index
    %c0_52 = arith.constant 0 : index
    %169 = vector.load %arg6[%c0_51, %c0_52] : memref<1x32xf32, #tpu.memory_space<vmem>>, vector<1x32xf32>
    %170 = vector.broadcast %169 : vector<1x32xf32> to vector<16x32xf32>
    %171 = arith.addf %168, %170 : vector<16x32xf32>
    %c0_53 = arith.constant 0 : index
    %c0_54 = arith.constant 0 : index
    %172 = vector.load %arg7[%c0_53, %c0_54] : memref<16x32xf32, #tpu.memory_space<vmem>>, vector<16x32xf32>
    tpu.vector_store %arg7[%c0_53, %c0_54], %171 {strides = array<i32>} : memref<16x32xf32, #tpu.memory_space<vmem>>, vector<16x32xf32>,
    return
  }
}

</mosaic_0001>

<llo_original>
// kernel: _forward_jit.1
$region0: #{_forward_jit.1}
  #allocation0 [shape = 'u32[]', space=smem, size = 0x4, offset = 0x4, fixed_abs, tag = 'smem constant byte address 0x4 - core index']
  #allocation1 [shape = 'u32[144,128]{1,0:T(1,128)}', space=vmem, size = 0x12000, scoped, tag = 'internal scratch']
  %s0 = inlined_call_operand.vmem [shape: f32[16,32], index: 0, kind: input, shape index: {}]
  %s1 = inlined_call_operand.vmem [shape: f32[2,8,8], index: 1, kind: input, shape index: {}]
  %s2 = inlined_call_operand.vmem [shape: f32[2,1,8], index: 2, kind: input, shape index: {}]
  %s3 = inlined_call_operand.vmem [shape: f32[32,96], index: 3, kind: input, shape index: {}]
  %s4 = inlined_call_operand.vmem [shape: f32[1,96], index: 4, kind: input, shape index: {}]
  %s5 = inlined_call_operand.hbm [shape: f32[32,32], index: 5, kind: input, shape index: {}]
  %s6 = inlined_call_operand.vmem [shape: f32[1,32], index: 6, kind: input, shape index: {}]
  %s7 = inlined_call_operand.hbm [shape: f32[16,32], index: 7, kind: output, shape index: {}]
  %s8 = sld [smem:[#allocation0]]
  $region42: #{_forward_jit.1} parent=0
    _
  %s10 = ssub.s32 1, %s8
  %s11 = scalar_select 0, %s10, %s8
  $region1: #{_forward_jit.1} parent=0
    #allocation2 [shape = 'u8[16384]{0}', space=vmem, size = 0x4000, scoped, tag = 'input window, operand 5, single buffered']
    #allocation3 [shape = 's32[1]{0}', space=sflag, size = 0x4, scoped, tag = 'scoped memory for _forward_jit.1']
    #allocation4 [shape = 's32[1]{0}', space=sflag, size = 0x4, scoped, tag = 'scoped memory for _forward_jit.1']
    #allocation5 [shape = 'u8[8192]{0}', space=vmem, size = 0x2000, scoped, tag = 'output window, operand 0, single buffered']
    %12 = vsyncpa [#allocation3], 0
    %13 = vsyncpa [#allocation4], 0
    // Predicated region
    $region2: #{_forward_jit.1} parent=1 // pred_check
      _
    $region3: #{_forward_jit.1} parent=1 // pred_check_branch
      %15 = sbr.rel (0) target = $region5
    $region4: #{_forward_jit.1} parent=1 // pred_region
      _
    $region5: #{_forward_jit.1} parent=1 // pred_fallthru
      _
    // Predicated region
    $region6: #{_forward_jit.1} parent=1 // pred_check
      _
    $region7: #{_forward_jit.1} parent=1 // pred_check_branch
      %17 = sbr.rel (0) target = $region9
    $region8: #{_forward_jit.1} parent=1 // pred_region
      _
    $region9: #{_forward_jit.1} parent=1 // pred_fallthru
      _
    // Predicated region
    $region10: #{_forward_jit.1} parent=1 // pred_check
      _
    $region11: #{_forward_jit.1} parent=1 // pred_check_branch
      %19 = sbr.rel (0) target = $region13
    $region12: #{_forward_jit.1} parent=1 // pred_region
      _
    $region13: #{_forward_jit.1} parent=1 // pred_fallthru
      _
    // Predicated region
    $region14: #{_forward_jit.1} parent=1 // pred_check
      _
    $region15: #{_forward_jit.1} parent=1 // pred_check_branch
      %21 = sbr.rel (0) target = $region17
    $region16: #{_forward_jit.1} parent=1 // pred_region
      _
    $region17: #{_forward_jit.1} parent=1 // pred_fallthru
      _
    // Predicated region
    $region18: #{_forward_jit.1} parent=1 // pred_check
      _
    $region19: #{_forward_jit.1} parent=1 // pred_check_branch
      %23 = sbr.rel (0) target = $region21
    $region20: #{_forward_jit.1} parent=1 // pred_region
      _
    $region21: #{_forward_jit.1} parent=1 // pred_fallthru
      _
    // Predicated region
    $region22: #{_forward_jit.1} parent=1 // pred_check
      _
    $region23: #{_forward_jit.1} parent=1 // pred_check_branch
      %25 = sbr.rel (0) target = $region25
    $region24: #{_forward_jit.1} parent=1 // pred_region
      %s27 = ssub.s32 512, 512
      %28 = vsyncadd [#allocation3], %s27
      %s29 = sshll.u32 [#allocation2], 4
      %s30 = int_to_ptr.vmem [resolvable:$true] %s29
      %35 = dma.hbm_to_vmem [thread:$0]  %s5, 512, %s30, [#allocation3], 128, 128, 8
    $region25: #{_forward_jit.1} parent=1 // pred_fallthru
      _
    // Predicated region
    $region26: #{_forward_jit.1} parent=1 // pred_check
      _
    $region27: #{_forward_jit.1} parent=1 // pred_check_branch
      %37 = sbr.rel (0) target = $region29
    $region28: #{_forward_jit.1} parent=1 // pred_region
      _
    $region29: #{_forward_jit.1} parent=1 // pred_fallthru
      _
    // Predicated region
    $region30: #{_forward_jit.1} parent=1 // pred_check
      _
    $region31: #{_forward_jit.1} parent=1 // pred_check_branch
      %39 = sbr.rel (0) target = $region33
    $region32: #{_forward_jit.1} parent=1 // pred_region
      %40 = dma.done [#allocation3], 512
    $region33: #{_forward_jit.1} parent=1 // pred_fallthru
      _
    %v41 = vld [vmem:[%s0] sm:$0xff]
    %v42 = vld [vmem:[%s0 + $0x8] sm:$0xff]
    %v43 = vld [vmem:[%s3] sm:$0xff]
    %v44 = vld [vmem:[%s3 + $0x8] sm:$0xff]
    %v45 = vld [vmem:[%s3 + $0x10] sm:$0xff]
    %v46 = vld [vmem:[%s3 + $0x18] sm:$0xff]
    %v47 = vld [vmem:[%s4] sm:$0x1]
    %v49 = vlaneseq
    %v50 = vshrl.u32 %v49, 7
    %v51 = vsub.s32 0, %v50
    %v52 = vrot.slane %v47, %v51
    %vm54 = vcmask 261120
    %v56 = vsel %vm54, %v41, 0
    %v59 = vsel %vm54, %v42, 0
    %61 = vmatprep.subr.mxu0 0.0
    %62 = vmatpush1.msra.mxu0 0.0
    %63 = vmatprep.subr.mxu0 0.0
    %64 = vmatpush1.msra.mxu0 0.0
    %65 = vmatprep.subr.mxu0 0.0
    %66 = vmatpush1.msra.mxu0 0.0
    %67 = vmatprep.subr.mxu0 0.0
    %68 = vmatpush1.msra.mxu0 0.0
    %69 = vmatprep.subr.mxu0 0.0
    %70 = vmatpush1.msra.mxu0 0.0
    %71 = vmatprep.subr.mxu0 0.0
    %72 = vmatpush1.msra.mxu0 0.0
    %73 = vmatprep.subr.mxu0 0.0
    %74 = vmatpush1.msra.mxu0 0.0
    %75 = vmatprep.subr.mxu0 0.0
    %76 = vmatpush1.msra.mxu0 0.0
    %77 = vmatprep.subr.mxu0 0.0
    %78 = vmatpush1.msra.mxu0 0.0
    %79 = vmatprep.subr.mxu0 0.0
    %80 = vmatpush1.msra.mxu0 0.0
    %81 = vmatprep.subr.mxu0 0.0
    %82 = vmatpush1.msra.mxu0 0.0
    %83 = vmatprep.subr.mxu0 0.0
    %84 = vmatpush1.msra.mxu0 0.0
    %85 = vmatprep.subr.mxu0 0.0
    %86 = vmatpush1.msra.mxu0 %v46
    %87 = vmatprep.subr.mxu0 0.0
    %88 = vmatpush1.msra.mxu0 %v45
    %89 = vmatprep.subr.mxu0 0.0
    %90 = vmatpush1.msra.mxu0 %v44
    %91 = vmatprep.subr.mxu0 0.0
    %92 = vmatpush1.msra.mxu0 %v43
    %93 = vmatprep.subr.mxu0 0.0
    %94 = vmatpush2.msra.mxu0 0.0
    %95 = vmatprep.subr.mxu0 0.0
    %96 = vmatpush2.msra.mxu0 0.0
    %97 = vmatprep.subr.mxu0 0.0
    %98 = vmatpush2.msra.mxu0 0.0
    %99 = vmatprep.subr.mxu0 0.0
    %100 = vmatpush2.msra.mxu0 0.0
    %101 = vmatprep.subr.mxu0 0.0
    %102 = vmatpush2.msra.mxu0 0.0
    %103 = vmatprep.subr.mxu0 0.0
    %104 = vmatpush2.msra.mxu0 0.0
    %105 = vmatprep.subr.mxu0 0.0
    %106 = vmatpush2.msra.mxu0 0.0
    %107 = vmatprep.subr.mxu0 0.0
    %108 = vmatpush2.msra.mxu0 0.0
    %109 = vmatprep.subr.mxu0 0.0
    %110 = vmatpush2.msra.mxu0 0.0
    %111 = vmatprep.subr.mxu0 0.0
    %112 = vmatpush2.msra.mxu0 0.0
    %113 = vmatprep.subr.mxu0 0.0
    %114 = vmatpush2.msra.mxu0 0.0
    %115 = vmatprep.subr.mxu0 0.0
    %116 = vmatpush2.msra.mxu0 0.0
    %117 = vmatprep.subr.mxu0 0.0
    %118 = vmatpush2.msra.mxu0 0.0
    %119 = vmatprep.subr.mxu0 0.0
    %120 = vmatpush2.msra.mxu0 0.0
    %121 = vmatprep.subr.mxu0 0.0
    %122 = vmatpush2.msra.mxu0 0.0
    %123 = vmatprep.subr.mxu0 0.0
    %124 = vmatpush2.msra.mxu0 0.0
    %125 = vmatprep.mubr.f32.mxu0 0.0
    %126 = vmatmul.mubr.f32.gmra.mxu0 %v56
    %v127 = vpop.f32.mrf.mxu0
    %v128 = vadd.f32 %v52, %v127
    %v129 = vpop.f32.mrf.mxu0
    %130 = vmatprep.mubr.f32.mxu0 0.0
    %131 = vmatmul.mubr.f32.gmra.mxu0 %v59
    %v132 = vpop.f32.mrf.mxu0
    %v133 = vadd.f32 %v52, %v132
    %v134 = vpop.f32.mrf.mxu0
    %135 = vdwg.mxu0
    %v136 = vld [vmem:[%s1] sm:$0xff]
    %v137 = vld [vmem:[%s2] sm:$0x1]
    %139 = vrot.lane.b32.xlu0 %v128, 96
    %v140 = vpop.permute.xlu0 %139
    %vm141 = vcmask 64512
    %v142 = vsel %vm141, %v128, 0
    %v144 = vsel %vm141, %v140, 0
    %146 = vmatprep.subr.mxu0 0.0
    %147 = vmatpush1.xpose.msra.mxu0 0.0
    %148 = vmatprep.subr.mxu0 0.0
    %149 = vmatpush1.xpose.msra.mxu0 0.0
    %150 = vmatprep.subr.mxu0 0.0
    %151 = vmatpush1.xpose.msra.mxu0 0.0
    %152 = vmatprep.subr.mxu0 0.0
    %153 = vmatpush1.xpose.msra.mxu0 0.0
    %154 = vmatprep.subr.mxu0 0.0
    %155 = vmatpush1.xpose.msra.mxu0 0.0
    %156 = vmatprep.subr.mxu0 0.0
    %157 = vmatpush1.xpose.msra.mxu0 0.0
    %158 = vmatprep.subr.mxu0 0.0
    %159 = vmatpush1.xpose.msra.mxu0 0.0
    %160 = vmatprep.subr.mxu0 0.0
    %161 = vmatpush1.xpose.msra.mxu0 0.0
    %162 = vmatprep.subr.mxu0 0.0
    %163 = vmatpush1.xpose.msra.mxu0 0.0
    %164 = vmatprep.subr.mxu0 0.0
    %165 = vmatpush1.xpose.msra.mxu0 0.0
    %166 = vmatprep.subr.mxu0 0.0
    %167 = vmatpush1.xpose.msra.mxu0 0.0
    %168 = vmatprep.subr.mxu0 0.0
    %169 = vmatpush1.xpose.msra.mxu0 0.0
    %170 = vmatprep.subr.mxu0 0.0
    %171 = vmatpush1.xpose.msra.mxu0 0.0
    %172 = vmatprep.subr.mxu0 0.0
    %173 = vmatpush1.xpose.msra.mxu0 0.0
    %174 = vmatprep.subr.mxu0 0.0
    %175 = vmatpush1.xpose.msra.mxu0 0.0
    %176 = vmatprep.subr.mxu0 0.0
    %177 = vmatpush1.xpose.msra.mxu0 %v144
    %178 = vmatprep.subr.mxu0 0.0
    %179 = vmatpush2.xpose.msra.mxu0 0.0
    %180 = vmatprep.subr.mxu0 0.0
    %181 = vmatpush2.xpose.msra.mxu0 0.0
    %182 = vmatprep.subr.mxu0 0.0
    %183 = vmatpush2.xpose.msra.mxu0 0.0
    %184 = vmatprep.subr.mxu0 0.0
    %185 = vmatpush2.xpose.msra.mxu0 0.0
    %186 = vmatprep.subr.mxu0 0.0
    %187 = vmatpush2.xpose.msra.mxu0 0.0
    %188 = vmatprep.subr.mxu0 0.0
    %189 = vmatpush2.xpose.msra.mxu0 0.0
    %190 = vmatprep.subr.mxu0 0.0
    %191 = vmatpush2.xpose.msra.mxu0 0.0
    %192 = vmatprep.subr.mxu0 0.0
    %193 = vmatpush2.xpose.msra.mxu0 0.0
    %194 = vmatprep.subr.mxu0 0.0
    %195 = vmatpush2.xpose.msra.mxu0 0.0
    %196 = vmatprep.subr.mxu0 0.0
    %197 = vmatpush2.xpose.msra.mxu0 0.0
    %198 = vmatprep.subr.mxu0 0.0
    %199 = vmatpush2.xpose.msra.mxu0 0.0
    %200 = vmatprep.subr.mxu0 0.0
    %201 = vmatpush2.xpose.msra.mxu0 0.0
    %202 = vmatprep.subr.mxu0 0.0
    %203 = vmatpush2.xpose.msra.mxu0 0.0
    %204 = vmatprep.subr.mxu0 0.0
    %205 = vmatpush2.xpose.msra.mxu0 0.0
    %206 = vmatprep.subr.mxu0 0.0
    %207 = vmatpush2.xpose.msra.mxu0 0.0
    %208 = vmatprep.subr.mxu0 0.0
    %209 = vmatpush2.xpose.msra.mxu0 0.0
    %210 = vmatprep.mubr.f32.mxu0 0.0
    %211 = vmatmul.mubr.f32.gmra.mxu0 %v142
    %v212 = vpop.f32.mrf.mxu0
    %v213 = vadd.f32 0.0, %v212
    %v214 = vpop.f32.mrf.mxu0
    %215 = vdwg.mxu0
    %v217 = vlaneseq
    %v218 = vshrl.u32 %v217, 7
    %v219 = vsub.s32 0, %v218
    %v220 = vrot.slane %v137, %v219
    %v222 = vmul.f32 %v213, %v220
    %v223 = vadd.f32 %v222, %v136
    %v224 = vsel %vm141, %v223, -inf
    %225 = vmax.xlane.f32.xlu0 %v224
    %v226 = vpop.xlane.xlu0 %225
    %v227 = vsub.f32 %v223, %v226
    %v228 = vmul.f32 %v227, 1.442695
    %v229 = vpow.pop %v228
    %v230 = vsel %vm141, %v229, 0.0
    %231 = vadd.xlane.f32.xlu0 %v230
    %v232 = vpop.xlane.xlu0 %231
    %v233 = vrcp.pop %v232
    %v234 = vmul.f32 %v229, %v233
    %235 = vrot.lane.b32.xlu0 %v128, 64
    %v236 = vpop.permute.xlu0 %235
    %v239 = vsel %vm141, %v234, 0
    %241 = vmatprep.subr.mxu0 0.0
    %242 = vmatpush1.msra.mxu0 0.0
    %243 = vmatprep.subr.mxu0 0.0
    %244 = vmatpush1.msra.mxu0 0.0
    %245 = vmatprep.subr.mxu0 0.0
    %246 = vmatpush1.msra.mxu0 0.0
    %247 = vmatprep.subr.mxu0 0.0
    %248 = vmatpush1.msra.mxu0 0.0
    %249 = vmatprep.subr.mxu0 0.0
    %250 = vmatpush1.msra.mxu0 0.0
    %251 = vmatprep.subr.mxu0 0.0
    %252 = vmatpush1.msra.mxu0 0.0
    %253 = vmatprep.subr.mxu0 0.0
    %254 = vmatpush1.msra.mxu0 0.0
    %255 = vmatprep.subr.mxu0 0.0
    %256 = vmatpush1.msra.mxu0 0.0
    %257 = vmatprep.subr.mxu0 0.0
    %258 = vmatpush1.msra.mxu0 0.0
    %259 = vmatprep.subr.mxu0 0.0
    %260 = vmatpush1.msra.mxu0 0.0
    %261 = vmatprep.subr.mxu0 0.0
    %262 = vmatpush1.msra.mxu0 0.0
    %263 = vmatprep.subr.mxu0 0.0
    %264 = vmatpush1.msra.mxu0 0.0
    %265 = vmatprep.subr.mxu0 0.0
    %266 = vmatpush1.msra.mxu0 0.0
    %267 = vmatprep.subr.mxu0 0.0
    %268 = vmatpush1.msra.mxu0 0.0
    %269 = vmatprep.subr.mxu0 0.0
    %270 = vmatpush1.msra.mxu0 0.0
    %271 = vmatprep.subr.mxu0 0.0
    %272 = vmatpush1.msra.mxu0 %v236
    %273 = vmatprep.subr.mxu0 0.0
    %274 = vmatpush2.msra.mxu0 0.0
    %275 = vmatprep.subr.mxu0 0.0
    %276 = vmatpush2.msra.mxu0 0.0
    %277 = vmatprep.subr.mxu0 0.0
    %278 = vmatpush2.msra.mxu0 0.0
    %279 = vmatprep.subr.mxu0 0.0
    %280 = vmatpush2.msra.mxu0 0.0
    %281 = vmatprep.subr.mxu0 0.0
    %282 = vmatpush2.msra.mxu0 0.0
    %283 = vmatprep.subr.mxu0 0.0
    %284 = vmatpush2.msra.mxu0 0.0
    %285 = vmatprep.subr.mxu0 0.0
    %286 = vmatpush2.msra.mxu0 0.0
    %287 = vmatprep.subr.mxu0 0.0
    %288 = vmatpush2.msra.mxu0 0.0
    %289 = vmatprep.subr.mxu0 0.0
    %290 = vmatpush2.msra.mxu0 0.0
    %291 = vmatprep.subr.mxu0 0.0
    %292 = vmatpush2.msra.mxu0 0.0
    %293 = vmatprep.subr.mxu0 0.0
    %294 = vmatpush2.msra.mxu0 0.0
    %295 = vmatprep.subr.mxu0 0.0
    %296 = vmatpush2.msra.mxu0 0.0
    %297 = vmatprep.subr.mxu0 0.0
    %298 = vmatpush2.msra.mxu0 0.0
    %299 = vmatprep.subr.mxu0 0.0
    %300 = vmatpush2.msra.mxu0 0.0
    %301 = vmatprep.subr.mxu0 0.0
    %302 = vmatpush2.msra.mxu0 0.0
    %303 = vmatprep.subr.mxu0 0.0
    %304 = vmatpush2.msra.mxu0 0.0
    %305 = vmatprep.mubr.f32.mxu0 0.0
    %306 = vmatmul.mubr.f32.gmra.mxu0 %v239
    %v307 = vpop.f32.mrf.mxu0
    %v308 = vadd.f32 0.0, %v307
    %v309 = vpop.f32.mrf.mxu0
    %310 = vdwg.mxu0
    %311 = vrot.lane.b32.xlu0 %v128, 120
    %v312 = vpop.permute.xlu0 %311
    %313 = vrot.lane.b32.xlu0 %v128, 88
    %v314 = vpop.permute.xlu0 %313
    %v315 = vsel %vm141, %v312, 0
    %v317 = vsel %vm141, %v314, 0
    %319 = vmatprep.subr.mxu0 0.0
    %320 = vmatpush1.xpose.msra.mxu0 0.0
    %321 = vmatprep.subr.mxu0 0.0
    %322 = vmatpush1.xpose.msra.mxu0 0.0
    %323 = vmatprep.subr.mxu0 0.0
    %324 = vmatpush1.xpose.msra.mxu0 0.0
    %325 = vmatprep.subr.mxu0 0.0
    %326 = vmatpush1.xpose.msra.mxu0 0.0
    %327 = vmatprep.subr.mxu0 0.0
    %328 = vmatpush1.xpose.msra.mxu0 0.0
    %329 = vmatprep.subr.mxu0 0.0
    %330 = vmatpush1.xpose.msra.mxu0 0.0
    %331 = vmatprep.subr.mxu0 0.0
    %332 = vmatpush1.xpose.msra.mxu0 0.0
    %333 = vmatprep.subr.mxu0 0.0
    %334 = vmatpush1.xpose.msra.mxu0 0.0
    %335 = vmatprep.subr.mxu0 0.0
    %336 = vmatpush1.xpose.msra.mxu0 0.0
    %337 = vmatprep.subr.mxu0 0.0
    %338 = vmatpush1.xpose.msra.mxu0 0.0
    %339 = vmatprep.subr.mxu0 0.0
    %340 = vmatpush1.xpose.msra.mxu0 0.0
    %341 = vmatprep.subr.mxu0 0.0
    %342 = vmatpush1.xpose.msra.mxu0 0.0
    %343 = vmatprep.subr.mxu0 0.0
    %344 = vmatpush1.xpose.msra.mxu0 0.0
    %345 = vmatprep.subr.mxu0 0.0
    %346 = vmatpush1.xpose.msra.mxu0 0.0
    %347 = vmatprep.subr.mxu0 0.0
    %348 = vmatpush1.xpose.msra.mxu0 0.0
    %349 = vmatprep.subr.mxu0 0.0
    %350 = vmatpush1.xpose.msra.mxu0 %v317
    %351 = vmatprep.subr.mxu0 0.0
    %352 = vmatpush2.xpose.msra.mxu0 0.0
    %353 = vmatprep.subr.mxu0 0.0
    %354 = vmatpush2.xpose.msra.mxu0 0.0
    %355 = vmatprep.subr.mxu0 0.0
    %356 = vmatpush2.xpose.msra.mxu0 0.0
    %357 = vmatprep.subr.mxu0 0.0
    %358 = vmatpush2.xpose.msra.mxu0 0.0
    %359 = vmatprep.subr.mxu0 0.0
    %360 = vmatpush2.xpose.msra.mxu0 0.0
    %361 = vmatprep.subr.mxu0 0.0
    %362 = vmatpush2.xpose.msra.mxu0 0.0
    %363 = vmatprep.subr.mxu0 0.0
    %364 = vmatpush2.xpose.msra.mxu0 0.0
    %365 = vmatprep.subr.mxu0 0.0
    %366 = vmatpush2.xpose.msra.mxu0 0.0
    %367 = vmatprep.subr.mxu0 0.0
    %368 = vmatpush2.xpose.msra.mxu0 0.0
    %369 = vmatprep.subr.mxu0 0.0
    %370 = vmatpush2.xpose.msra.mxu0 0.0
    %371 = vmatprep.subr.mxu0 0.0
    %372 = vmatpush2.xpose.msra.mxu0 0.0
    %373 = vmatprep.subr.mxu0 0.0
    %374 = vmatpush2.xpose.msra.mxu0 0.0
    %375 = vmatprep.subr.mxu0 0.0
    %376 = vmatpush2.xpose.msra.mxu0 0.0
    %377 = vmatprep.subr.mxu0 0.0
    %378 = vmatpush2.xpose.msra.mxu0 0.0
    %379 = vmatprep.subr.mxu0 0.0
    %380 = vmatpush2.xpose.msra.mxu0 0.0
    %381 = vmatprep.subr.mxu0 0.0
    %382 = vmatpush2.xpose.msra.mxu0 0.0
    %383 = vmatprep.mubr.f32.mxu0 0.0
    %384 = vmatmul.mubr.f32.gmra.mxu0 %v315
    %v385 = vpop.f32.mrf.mxu0
    %v386 = vadd.f32 0.0, %v385
    %v387 = vpop.f32.mrf.mxu0
    %388 = vdwg.mxu0
    %v389 = vmul.f32 %v386, %v220
    %v390 = vadd.f32 %v389, %v136
    %v391 = vsel %vm141, %v390, -inf
    %392 = vmax.xlane.f32.xlu0 %v391
    %v393 = vpop.xlane.xlu0 %392
    %v394 = vsub.f32 %v390, %v393
    %v395 = vmul.f32 %v394, 1.442695
    %v396 = vpow.pop %v395
    %v397 = vsel %vm141, %v396, 0.0
    %398 = vadd.xlane.f32.xlu0 %v397
    %v399 = vpop.xlane.xlu0 %398
    %v400 = vrcp.pop %v399
    %v401 = vmul.f32 %v396, %v400
    %402 = vrot.lane.b32.xlu0 %v128, 56
    %v403 = vpop.permute.xlu0 %402
    %v406 = vsel %vm141, %v401, 0
    %408 = vmatprep.subr.mxu0 0.0
    %409 = vmatpush1.msra.mxu0 0.0
    %410 = vmatprep.subr.mxu0 0.0
    %411 = vmatpush1.msra.mxu0 0.0
    %412 = vmatprep.subr.mxu0 0.0
    %413 = vmatpush1.msra.mxu0 0.0
    %414 = vmatprep.subr.mxu0 0.0
    %415 = vmatpush1.msra.mxu0 0.0
    %416 = vmatprep.subr.mxu0 0.0
    %417 = vmatpush1.msra.mxu0 0.0
    %418 = vmatprep.subr.mxu0 0.0
    %419 = vmatpush1.msra.mxu0 0.0
    %420 = vmatprep.subr.mxu0 0.0
    %421 = vmatpush1.msra.mxu0 0.0
    %422 = vmatprep.subr.mxu0 0.0
    %423 = vmatpush1.msra.mxu0 0.0
    %424 = vmatprep.subr.mxu0 0.0
    %425 = vmatpush1.msra.mxu0 0.0
    %426 = vmatprep.subr.mxu0 0.0
    %427 = vmatpush1.msra.mxu0 0.0
    %428 = vmatprep.subr.mxu0 0.0
    %429 = vmatpush1.msra.mxu0 0.0
    %430 = vmatprep.subr.mxu0 0.0
    %431 = vmatpush1.msra.mxu0 0.0
    %432 = vmatprep.subr.mxu0 0.0
    %433 = vmatpush1.msra.mxu0 0.0
    %434 = vmatprep.subr.mxu0 0.0
    %435 = vmatpush1.msra.mxu0 0.0
    %436 = vmatprep.subr.mxu0 0.0
    %437 = vmatpush1.msra.mxu0 0.0
    %438 = vmatprep.subr.mxu0 0.0
    %439 = vmatpush1.msra.mxu0 %v403
    %440 = vmatprep.subr.mxu0 0.0
    %441 = vmatpush2.msra.mxu0 0.0
    %442 = vmatprep.subr.mxu0 0.0
    %443 = vmatpush2.msra.mxu0 0.0
    %444 = vmatprep.subr.mxu0 0.0
    %445 = vmatpush2.msra.mxu0 0.0
    %446 = vmatprep.subr.mxu0 0.0
    %447 = vmatpush2.msra.mxu0 0.0
    %448 = vmatprep.subr.mxu0 0.0
    %449 = vmatpush2.msra.mxu0 0.0
    %450 = vmatprep.subr.mxu0 0.0
    %451 = vmatpush2.msra.mxu0 0.0
    %452 = vmatprep.subr.mxu0 0.0
    %453 = vmatpush2.msra.mxu0 0.0
    %454 = vmatprep.subr.mxu0 0.0
    %455 = vmatpush2.msra.mxu0 0.0
    %456 = vmatprep.subr.mxu0 0.0
    %457 = vmatpush2.msra.mxu0 0.0
    %458 = vmatprep.subr.mxu0 0.0
    %459 = vmatpush2.msra.mxu0 0.0
    %460 = vmatprep.subr.mxu0 0.0
    %461 = vmatpush2.msra.mxu0 0.0
    %462 = vmatprep.subr.mxu0 0.0
    %463 = vmatpush2.msra.mxu0 0.0
    %464 = vmatprep.subr.mxu0 0.0
    %465 = vmatpush2.msra.mxu0 0.0
    %466 = vmatprep.subr.mxu0 0.0
    %467 = vmatpush2.msra.mxu0 0.0
    %468 = vmatprep.subr.mxu0 0.0
    %469 = vmatpush2.msra.mxu0 0.0
    %470 = vmatprep.subr.mxu0 0.0
    %471 = vmatpush2.msra.mxu0 0.0
    %472 = vmatprep.mubr.f32.mxu0 0.0
    %473 = vmatmul.mubr.f32.gmra.mxu0 %v406
    %v474 = vpop.f32.mrf.mxu0
    %v475 = vadd.f32 0.0, %v474
    %v476 = vpop.f32.mrf.mxu0
    %477 = vdwg.mxu0
    %478 = vrot.lane.b32.xlu0 %v128, 112
    %v479 = vpop.permute.xlu0 %478
    %480 = vrot.lane.b32.xlu0 %v128, 80
    %v481 = vpop.permute.xlu0 %480
    %v482 = vsel %vm141, %v479, 0
    %v484 = vsel %vm141, %v481, 0
    %486 = vmatprep.subr.mxu0 0.0
    %487 = vmatpush1.xpose.msra.mxu0 0.0
    %488 = vmatprep.subr.mxu0 0.0
    %489 = vmatpush1.xpose.msra.mxu0 0.0
    %490 = vmatprep.subr.mxu0 0.0
    %491 = vmatpush1.xpose.msra.mxu0 0.0
    %492 = vmatprep.subr.mxu0 0.0
    %493 = vmatpush1.xpose.msra.mxu0 0.0
    %494 = vmatprep.subr.mxu0 0.0
    %495 = vmatpush1.xpose.msra.mxu0 0.0
    %496 = vmatprep.subr.mxu0 0.0
    %497 = vmatpush1.xpose.msra.mxu0 0.0
    %498 = vmatprep.subr.mxu0 0.0
    %499 = vmatpush1.xpose.msra.mxu0 0.0
    %500 = vmatprep.subr.mxu0 0.0
    %501 = vmatpush1.xpose.msra.mxu0 0.0
    %502 = vmatprep.subr.mxu0 0.0
    %503 = vmatpush1.xpose.msra.mxu0 0.0
    %504 = vmatprep.subr.mxu0 0.0
    %505 = vmatpush1.xpose.msra.mxu0 0.0
    %506 = vmatprep.subr.mxu0 0.0
    %507 = vmatpush1.xpose.msra.mxu0 0.0
    %508 = vmatprep.subr.mxu0 0.0
    %509 = vmatpush1.xpose.msra.mxu0 0.0
    %510 = vmatprep.subr.mxu0 0.0
    %511 = vmatpush1.xpose.msra.mxu0 0.0
    %512 = vmatprep.subr.mxu0 0.0
    %513 = vmatpush1.xpose.msra.mxu0 0.0
    %514 = vmatprep.subr.mxu0 0.0
    %515 = vmatpush1.xpose.msra.mxu0 0.0
    %516 = vmatprep.subr.mxu0 0.0
    %517 = vmatpush1.xpose.msra.mxu0 %v484
    %518 = vmatprep.subr.mxu0 0.0
    %519 = vmatpush2.xpose.msra.mxu0 0.0
    %520 = vmatprep.subr.mxu0 0.0
    %521 = vmatpush2.xpose.msra.mxu0 0.0
    %522 = vmatprep.subr.mxu0 0.0
    %523 = vmatpush2.xpose.msra.mxu0 0.0
    %524 = vmatprep.subr.mxu0 0.0
    %525 = vmatpush2.xpose.msra.mxu0 0.0
    %526 = vmatprep.subr.mxu0 0.0
    %527 = vmatpush2.xpose.msra.mxu0 0.0
    %528 = vmatprep.subr.mxu0 0.0
    %529 = vmatpush2.xpose.msra.mxu0 0.0
    %530 = vmatprep.subr.mxu0 0.0
    %531 = vmatpush2.xpose.msra.mxu0 0.0
    %532 = vmatprep.subr.mxu0 0.0
    %533 = vmatpush2.xpose.msra.mxu0 0.0
    %534 = vmatprep.subr.mxu0 0.0
    %535 = vmatpush2.xpose.msra.mxu0 0.0
    %536 = vmatprep.subr.mxu0 0.0
    %537 = vmatpush2.xpose.msra.mxu0 0.0
    %538 = vmatprep.subr.mxu0 0.0
    %539 = vmatpush2.xpose.msra.mxu0 0.0
    %540 = vmatprep.subr.mxu0 0.0
    %541 = vmatpush2.xpose.msra.mxu0 0.0
    %542 = vmatprep.subr.mxu0 0.0
    %543 = vmatpush2.xpose.msra.mxu0 0.0
    %544 = vmatprep.subr.mxu0 0.0
    %545 = vmatpush2.xpose.msra.mxu0 0.0
    %546 = vmatprep.subr.mxu0 0.0
    %547 = vmatpush2.xpose.msra.mxu0 0.0
    %548 = vmatprep.subr.mxu0 0.0
    %549 = vmatpush2.xpose.msra.mxu0 0.0
    %550 = vmatprep.mubr.f32.mxu0 0.0
    %551 = vmatmul.mubr.f32.gmra.mxu0 %v482
    %v552 = vpop.f32.mrf.mxu0
    %v553 = vadd.f32 0.0, %v552
    %v554 = vpop.f32.mrf.mxu0
    %555 = vdwg.mxu0
    %v556 = vmul.f32 %v553, %v220
    %v557 = vadd.f32 %v556, %v136
    %v558 = vsel %vm141, %v557, -inf
    %559 = vmax.xlane.f32.xlu0 %v558
    %v560 = vpop.xlane.xlu0 %559
    %v561 = vsub.f32 %v557, %v560
    %v562 = vmul.f32 %v561, 1.442695
    %v563 = vpow.pop %v562
    %v564 = vsel %vm141, %v563, 0.0
    %565 = vadd.xlane.f32.xlu0 %v564
    %v566 = vpop.xlane.xlu0 %565
    %v567 = vrcp.pop %v566
    %v568 = vmul.f32 %v563, %v567
    %569 = vrot.lane.b32.xlu0 %v128, 48
    %v570 = vpop.permute.xlu0 %569
    %v573 = vsel %vm141, %v568, 0
    %575 = vmatprep.subr.mxu0 0.0
    %576 = vmatpush1.msra.mxu0 0.0
    %577 = vmatprep.subr.mxu0 0.0
    %578 = vmatpush1.msra.mxu0 0.0
    %579 = vmatprep.subr.mxu0 0.0
    %580 = vmatpush1.msra.mxu0 0.0
    %581 = vmatprep.subr.mxu0 0.0
    %582 = vmatpush1.msra.mxu0 0.0
    %583 = vmatprep.subr.mxu0 0.0
    %584 = vmatpush1.msra.mxu0 0.0
    %585 = vmatprep.subr.mxu0 0.0
    %586 = vmatpush1.msra.mxu0 0.0
    %587 = vmatprep.subr.mxu0 0.0
    %588 = vmatpush1.msra.mxu0 0.0
    %589 = vmatprep.subr.mxu0 0.0
    %590 = vmatpush1.msra.mxu0 0.0
    %591 = vmatprep.subr.mxu0 0.0
    %592 = vmatpush1.msra.mxu0 0.0
    %593 = vmatprep.subr.mxu0 0.0
    %594 = vmatpush1.msra.mxu0 0.0
    %595 = vmatprep.subr.mxu0 0.0
    %596 = vmatpush1.msra.mxu0 0.0
    %597 = vmatprep.subr.mxu0 0.0
    %598 = vmatpush1.msra.mxu0 0.0
    %599 = vmatprep.subr.mxu0 0.0
    %600 = vmatpush1.msra.mxu0 0.0
    %601 = vmatprep.subr.mxu0 0.0
    %602 = vmatpush1.msra.mxu0 0.0
    %603 = vmatprep.subr.mxu0 0.0
    %604 = vmatpush1.msra.mxu0 0.0
    %605 = vmatprep.subr.mxu0 0.0
    %606 = vmatpush1.msra.mxu0 %v570
    %607 = vmatprep.subr.mxu0 0.0
    %608 = vmatpush2.msra.mxu0 0.0
    %609 = vmatprep.subr.mxu0 0.0
    %610 = vmatpush2.msra.mxu0 0.0
    %611 = vmatprep.subr.mxu0 0.0
    %612 = vmatpush2.msra.mxu0 0.0
    %613 = vmatprep.subr.mxu0 0.0
    %614 = vmatpush2.msra.mxu0 0.0
    %615 = vmatprep.subr.mxu0 0.0
    %616 = vmatpush2.msra.mxu0 0.0
    %617 = vmatprep.subr.mxu0 0.0
    %618 = vmatpush2.msra.mxu0 0.0
    %619 = vmatprep.subr.mxu0 0.0
    %620 = vmatpush2.msra.mxu0 0.0
    %621 = vmatprep.subr.mxu0 0.0
    %622 = vmatpush2.msra.mxu0 0.0
    %623 = vmatprep.subr.mxu0 0.0
    %624 = vmatpush2.msra.mxu0 0.0
    %625 = vmatprep.subr.mxu0 0.0
    %626 = vmatpush2.msra.mxu0 0.0
    %627 = vmatprep.subr.mxu0 0.0
    %628 = vmatpush2.msra.mxu0 0.0
    %629 = vmatprep.subr.mxu0 0.0
    %630 = vmatpush2.msra.mxu0 0.0
    %631 = vmatprep.subr.mxu0 0.0
    %632 = vmatpush2.msra.mxu0 0.0
    %633 = vmatprep.subr.mxu0 0.0
    %634 = vmatpush2.msra.mxu0 0.0
    %635 = vmatprep.subr.mxu0 0.0
    %636 = vmatpush2.msra.mxu0 0.0
    %637 = vmatprep.subr.mxu0 0.0
    %638 = vmatpush2.msra.mxu0 0.0
    %639 = vmatprep.mubr.f32.mxu0 0.0
    %640 = vmatmul.mubr.f32.gmra.mxu0 %v573
    %v641 = vpop.f32.mrf.mxu0
    %v642 = vadd.f32 0.0, %v641
    %v643 = vpop.f32.mrf.mxu0
    %644 = vdwg.mxu0
    %645 = vrot.lane.b32.xlu0 %v128, 104
    %v646 = vpop.permute.xlu0 %645
    %647 = vrot.lane.b32.xlu0 %v128, 72
    %v648 = vpop.permute.xlu0 %647
    %v649 = vsel %vm141, %v646, 0
    %v651 = vsel %vm141, %v648, 0
    %653 = vmatprep.subr.mxu0 0.0
    %654 = vmatpush1.xpose.msra.mxu0 0.0
    %655 = vmatprep.subr.mxu0 0.0
    %656 = vmatpush1.xpose.msra.mxu0 0.0
    %657 = vmatprep.subr.mxu0 0.0
    %658 = vmatpush1.xpose.msra.mxu0 0.0
    %659 = vmatprep.subr.mxu0 0.0
    %660 = vmatpush1.xpose.msra.mxu0 0.0
    %661 = vmatprep.subr.mxu0 0.0
    %662 = vmatpush1.xpose.msra.mxu0 0.0
    %663 = vmatprep.subr.mxu0 0.0
    %664 = vmatpush1.xpose.msra.mxu0 0.0
    %665 = vmatprep.subr.mxu0 0.0
    %666 = vmatpush1.xpose.msra.mxu0 0.0
    %667 = vmatprep.subr.mxu0 0.0
    %668 = vmatpush1.xpose.msra.mxu0 0.0
    %669 = vmatprep.subr.mxu0 0.0
    %670 = vmatpush1.xpose.msra.mxu0 0.0
    %671 = vmatprep.subr.mxu0 0.0
    %672 = vmatpush1.xpose.msra.mxu0 0.0
    %673 = vmatprep.subr.mxu0 0.0
    %674 = vmatpush1.xpose.msra.mxu0 0.0
    %675 = vmatprep.subr.mxu0 0.0
    %676 = vmatpush1.xpose.msra.mxu0 0.0
    %677 = vmatprep.subr.mxu0 0.0
    %678 = vmatpush1.xpose.msra.mxu0 0.0
    %679 = vmatprep.subr.mxu0 0.0
    %680 = vmatpush1.xpose.msra.mxu0 0.0
    %681 = vmatprep.subr.mxu0 0.0
    %682 = vmatpush1.xpose.msra.mxu0 0.0
    %683 = vmatprep.subr.mxu0 0.0
    %684 = vmatpush1.xpose.msra.mxu0 %v651
    %685 = vmatprep.subr.mxu0 0.0
    %686 = vmatpush2.xpose.msra.mxu0 0.0
    %687 = vmatprep.subr.mxu0 0.0
    %688 = vmatpush2.xpose.msra.mxu0 0.0
    %689 = vmatprep.subr.mxu0 0.0
    %690 = vmatpush2.xpose.msra.mxu0 0.0
    %691 = vmatprep.subr.mxu0 0.0
    %692 = vmatpush2.xpose.msra.mxu0 0.0
    %693 = vmatprep.subr.mxu0 0.0
    %694 = vmatpush2.xpose.msra.mxu0 0.0
    %695 = vmatprep.subr.mxu0 0.0
    %696 = vmatpush2.xpose.msra.mxu0 0.0
    %697 = vmatprep.subr.mxu0 0.0
    %698 = vmatpush2.xpose.msra.mxu0 0.0
    %699 = vmatprep.subr.mxu0 0.0
    %700 = vmatpush2.xpose.msra.mxu0 0.0
    %701 = vmatprep.subr.mxu0 0.0
    %702 = vmatpush2.xpose.msra.mxu0 0.0
    %703 = vmatprep.subr.mxu0 0.0
    %704 = vmatpush2.xpose.msra.mxu0 0.0
    %705 = vmatprep.subr.mxu0 0.0
    %706 = vmatpush2.xpose.msra.mxu0 0.0
    %707 = vmatprep.subr.mxu0 0.0
    %708 = vmatpush2.xpose.msra.mxu0 0.0
    %709 = vmatprep.subr.mxu0 0.0
    %710 = vmatpush2.xpose.msra.mxu0 0.0
    %711 = vmatprep.subr.mxu0 0.0
    %712 = vmatpush2.xpose.msra.mxu0 0.0
    %713 = vmatprep.subr.mxu0 0.0
    %714 = vmatpush2.xpose.msra.mxu0 0.0
    %715 = vmatprep.subr.mxu0 0.0
    %716 = vmatpush2.xpose.msra.mxu0 0.0
    %717 = vmatprep.mubr.f32.mxu0 0.0
    %718 = vmatmul.mubr.f32.gmra.mxu0 %v649
    %v719 = vpop.f32.mrf.mxu0
    %v720 = vadd.f32 0.0, %v719
    %v721 = vpop.f32.mrf.mxu0
    %722 = vdwg.mxu0
    %v723 = vmul.f32 %v720, %v220
    %v724 = vadd.f32 %v723, %v136
    %v725 = vsel %vm141, %v724, -inf
    %726 = vmax.xlane.f32.xlu0 %v725
    %v727 = vpop.xlane.xlu0 %726
    %v728 = vsub.f32 %v724, %v727
    %v729 = vmul.f32 %v728, 1.442695
    %v730 = vpow.pop %v729
    %v731 = vsel %vm141, %v730, 0.0
    %732 = vadd.xlane.f32.xlu0 %v731
    %v733 = vpop.xlane.xlu0 %732
    %v734 = vrcp.pop %v733
    %v735 = vmul.f32 %v730, %v734
    %736 = vrot.lane.b32.xlu0 %v128, 40
    %v737 = vpop.permute.xlu0 %736
    %v740 = vsel %vm141, %v735, 0
    %742 = vmatprep.subr.mxu0 0.0
    %743 = vmatpush1.msra.mxu0 0.0
    %744 = vmatprep.subr.mxu0 0.0
    %745 = vmatpush1.msra.mxu0 0.0
    %746 = vmatprep.subr.mxu0 0.0
    %747 = vmatpush1.msra.mxu0 0.0
    %748 = vmatprep.subr.mxu0 0.0
    %749 = vmatpush1.msra.mxu0 0.0
    %750 = vmatprep.subr.mxu0 0.0
    %751 = vmatpush1.msra.mxu0 0.0
    %752 = vmatprep.subr.mxu0 0.0
    %753 = vmatpush1.msra.mxu0 0.0
    %754 = vmatprep.subr.mxu0 0.0
    %755 = vmatpush1.msra.mxu0 0.0
    %756 = vmatprep.subr.mxu0 0.0
    %757 = vmatpush1.msra.mxu0 0.0
    %758 = vmatprep.subr.mxu0 0.0
    %759 = vmatpush1.msra.mxu0 0.0
    %760 = vmatprep.subr.mxu0 0.0
    %761 = vmatpush1.msra.mxu0 0.0
    %762 = vmatprep.subr.mxu0 0.0
    %763 = vmatpush1.msra.mxu0 0.0
    %764 = vmatprep.subr.mxu0 0.0
    %765 = vmatpush1.msra.mxu0 0.0
    %766 = vmatprep.subr.mxu0 0.0
    %767 = vmatpush1.msra.mxu0 0.0
    %768 = vmatprep.subr.mxu0 0.0
    %769 = vmatpush1.msra.mxu0 0.0
    %770 = vmatprep.subr.mxu0 0.0
    %771 = vmatpush1.msra.mxu0 0.0
    %772 = vmatprep.subr.mxu0 0.0
    %773 = vmatpush1.msra.mxu0 %v737
    %774 = vmatprep.subr.mxu0 0.0
    %775 = vmatpush2.msra.mxu0 0.0
    %776 = vmatprep.subr.mxu0 0.0
    %777 = vmatpush2.msra.mxu0 0.0
    %778 = vmatprep.subr.mxu0 0.0
    %779 = vmatpush2.msra.mxu0 0.0
    %780 = vmatprep.subr.mxu0 0.0
    %781 = vmatpush2.msra.mxu0 0.0
    %782 = vmatprep.subr.mxu0 0.0
    %783 = vmatpush2.msra.mxu0 0.0
    %784 = vmatprep.subr.mxu0 0.0
    %785 = vmatpush2.msra.mxu0 0.0
    %786 = vmatprep.subr.mxu0 0.0
    %787 = vmatpush2.msra.mxu0 0.0
    %788 = vmatprep.subr.mxu0 0.0
    %789 = vmatpush2.msra.mxu0 0.0
    %790 = vmatprep.subr.mxu0 0.0
    %791 = vmatpush2.msra.mxu0 0.0
    %792 = vmatprep.subr.mxu0 0.0
    %793 = vmatpush2.msra.mxu0 0.0
    %794 = vmatprep.subr.mxu0 0.0
    %795 = vmatpush2.msra.mxu0 0.0
    %796 = vmatprep.subr.mxu0 0.0
    %797 = vmatpush2.msra.mxu0 0.0
    %798 = vmatprep.subr.mxu0 0.0
    %799 = vmatpush2.msra.mxu0 0.0
    %800 = vmatprep.subr.mxu0 0.0
    %801 = vmatpush2.msra.mxu0 0.0
    %802 = vmatprep.subr.mxu0 0.0
    %803 = vmatpush2.msra.mxu0 0.0
    %804 = vmatprep.subr.mxu0 0.0
    %805 = vmatpush2.msra.mxu0 0.0
    %806 = vmatprep.mubr.f32.mxu0 0.0
    %807 = vmatmul.mubr.f32.gmra.mxu0 %v740
    %v808 = vpop.f32.mrf.mxu0
    %v809 = vadd.f32 0.0, %v808
    %v810 = vpop.f32.mrf.mxu0
    %811 = vdwg.mxu0
    %813 = vrot.lane.b32.xlu0 %v475, 8
    %v814 = vpop.permute.xlu0 %813
    %817 = vrot.lane.b32.xlu0 %v642, 16
    %v818 = vpop.permute.xlu0 %817
    %821 = vrot.lane.b32.xlu0 %v809, 24
    %v822 = vpop.permute.xlu0 %821
    %v824 = vsel %vm141, %v308, %v814
    %vm825 = vcmask 130048
    %v826 = vsel %vm825, %v824, %v818
    %vm827 = vcmask 195584
    %v828 = vsel %vm827, %v826, %v822
    %s829 = scalar_lea.vmem %s1, 8
    %v830 = vld [vmem:[%s829] sm:$0xff]
    %s831 = scalar_lea.vmem %s2, 1
    %v832 = vld [vmem:[%s831] sm:$0x1]
    %834 = vrot.lane.b32.xlu0 %v133, 96
    %v835 = vpop.permute.xlu0 %834
    %v836 = vsel %vm141, %v133, 0
    %v838 = vsel %vm141, %v835, 0
    %840 = vmatprep.subr.mxu0 0.0
    %841 = vmatpush1.xpose.msra.mxu0 0.0
    %842 = vmatprep.subr.mxu0 0.0
    %843 = vmatpush1.xpose.msra.mxu0 0.0
    %844 = vmatprep.subr.mxu0 0.0
    %845 = vmatpush1.xpose.msra.mxu0 0.0
    %846 = vmatprep.subr.mxu0 0.0
    %847 = vmatpush1.xpose.msra.mxu0 0.0
    %848 = vmatprep.subr.mxu0 0.0
    %849 = vmatpush1.xpose.msra.mxu0 0.0
    %850 = vmatprep.subr.mxu0 0.0
    %851 = vmatpush1.xpose.msra.mxu0 0.0
    %852 = vmatprep.subr.mxu0 0.0
    %853 = vmatpush1.xpose.msra.mxu0 0.0
    %854 = vmatprep.subr.mxu0 0.0
    %855 = vmatpush1.xpose.msra.mxu0 0.0
    %856 = vmatprep.subr.mxu0 0.0
    %857 = vmatpush1.xpose.msra.mxu0 0.0
    %858 = vmatprep.subr.mxu0 0.0
    %859 = vmatpush1.xpose.msra.mxu0 0.0
    %860 = vmatprep.subr.mxu0 0.0
    %861 = vmatpush1.xpose.msra.mxu0 0.0
    %862 = vmatprep.subr.mxu0 0.0
    %863 = vmatpush1.xpose.msra.mxu0 0.0
    %864 = vmatprep.subr.mxu0 0.0
    %865 = vmatpush1.xpose.msra.mxu0 0.0
    %866 = vmatprep.subr.mxu0 0.0
    %867 = vmatpush1.xpose.msra.mxu0 0.0
    %868 = vmatprep.subr.mxu0 0.0
    %869 = vmatpush1.xpose.msra.mxu0 0.0
    %870 = vmatprep.subr.mxu0 0.0
    %871 = vmatpush1.xpose.msra.mxu0 %v838
    %872 = vmatprep.subr.mxu0 0.0
    %873 = vmatpush2.xpose.msra.mxu0 0.0
    %874 = vmatprep.subr.mxu0 0.0
    %875 = vmatpush2.xpose.msra.mxu0 0.0
    %876 = vmatprep.subr.mxu0 0.0
    %877 = vmatpush2.xpose.msra.mxu0 0.0
    %878 = vmatprep.subr.mxu0 0.0
    %879 = vmatpush2.xpose.msra.mxu0 0.0
    %880 = vmatprep.subr.mxu0 0.0
    %881 = vmatpush2.xpose.msra.mxu0 0.0
    %882 = vmatprep.subr.mxu0 0.0
    %883 = vmatpush2.xpose.msra.mxu0 0.0
    %884 = vmatprep.subr.mxu0 0.0
    %885 = vmatpush2.xpose.msra.mxu0 0.0
    %886 = vmatprep.subr.mxu0 0.0
    %887 = vmatpush2.xpose.msra.mxu0 0.0
    %888 = vmatprep.subr.mxu0 0.0
    %889 = vmatpush2.xpose.msra.mxu0 0.0
    %890 = vmatprep.subr.mxu0 0.0
    %891 = vmatpush2.xpose.msra.mxu0 0.0
    %892 = vmatprep.subr.mxu0 0.0
    %893 = vmatpush2.xpose.msra.mxu0 0.0
    %894 = vmatprep.subr.mxu0 0.0
    %895 = vmatpush2.xpose.msra.mxu0 0.0
    %896 = vmatprep.subr.mxu0 0.0
    %897 = vmatpush2.xpose.msra.mxu0 0.0
    %898 = vmatprep.subr.mxu0 0.0
    %899 = vmatpush2.xpose.msra.mxu0 0.0
    %900 = vmatprep.subr.mxu0 0.0
    %901 = vmatpush2.xpose.msra.mxu0 0.0
    %902 = vmatprep.subr.mxu0 0.0
    %903 = vmatpush2.xpose.msra.mxu0 0.0
    %904 = vmatprep.mubr.f32.mxu0 0.0
    %905 = vmatmul.mubr.f32.gmra.mxu0 %v836
    %v906 = vpop.f32.mrf.mxu0
    %v907 = vadd.f32 0.0, %v906
    %v908 = vpop.f32.mrf.mxu0
    %909 = vdwg.mxu0
    %v911 = vlaneseq
    %v912 = vshrl.u32 %v911, 7
    %v913 = vsub.s32 0, %v912
    %v914 = vrot.slane %v832, %v913
    %v916 = vmul.f32 %v907, %v914
    %v917 = vadd.f32 %v916, %v830
    %v918 = vsel %vm141, %v917, -inf
    %919 = vmax.xlane.f32.xlu0 %v918
    %v920 = vpop.xlane.xlu0 %919
    %v921 = vsub.f32 %v917, %v920
    %v922 = vmul.f32 %v921, 1.442695
    %v923 = vpow.pop %v922
    %v924 = vsel %vm141, %v923, 0.0
    %925 = vadd.xlane.f32.xlu0 %v924
    %v926 = vpop.xlane.xlu0 %925
    %v927 = vrcp.pop %v926
    %v928 = vmul.f32 %v923, %v927
    %929 = vrot.lane.b32.xlu0 %v133, 64
    %v930 = vpop.permute.xlu0 %929
    %v933 = vsel %vm141, %v928, 0
    %935 = vmatprep.subr.mxu0 0.0
    %936 = vmatpush1.msra.mxu0 0.0
    %937 = vmatprep.subr.mxu0 0.0
    %938 = vmatpush1.msra.mxu0 0.0
    %939 = vmatprep.subr.mxu0 0.0
    %940 = vmatpush1.msra.mxu0 0.0
    %941 = vmatprep.subr.mxu0 0.0
    %942 = vmatpush1.msra.mxu0 0.0
    %943 = vmatprep.subr.mxu0 0.0
    %944 = vmatpush1.msra.mxu0 0.0
    %945 = vmatprep.subr.mxu0 0.0
    %946 = vmatpush1.msra.mxu0 0.0
    %947 = vmatprep.subr.mxu0 0.0
    %948 = vmatpush1.msra.mxu0 0.0
    %949 = vmatprep.subr.mxu0 0.0
    %950 = vmatpush1.msra.mxu0 0.0
    %951 = vmatprep.subr.mxu0 0.0
    %952 = vmatpush1.msra.mxu0 0.0
    %953 = vmatprep.subr.mxu0 0.0
    %954 = vmatpush1.msra.mxu0 0.0
    %955 = vmatprep.subr.mxu0 0.0
    %956 = vmatpush1.msra.mxu0 0.0
    %957 = vmatprep.subr.mxu0 0.0
    %958 = vmatpush1.msra.mxu0 0.0
    %959 = vmatprep.subr.mxu0 0.0
    %960 = vmatpush1.msra.mxu0 0.0
    %961 = vmatprep.subr.mxu0 0.0
    %962 = vmatpush1.msra.mxu0 0.0
    %963 = vmatprep.subr.mxu0 0.0
    %964 = vmatpush1.msra.mxu0 0.0
    %965 = vmatprep.subr.mxu0 0.0
    %966 = vmatpush1.msra.mxu0 %v930
    %967 = vmatprep.subr.mxu0 0.0
    %968 = vmatpush2.msra.mxu0 0.0
    %969 = vmatprep.subr.mxu0 0.0
    %970 = vmatpush2.msra.mxu0 0.0
    %971 = vmatprep.subr.mxu0 0.0
    %972 = vmatpush2.msra.mxu0 0.0
    %973 = vmatprep.subr.mxu0 0.0
    %974 = vmatpush2.msra.mxu0 0.0
    %975 = vmatprep.subr.mxu0 0.0
    %976 = vmatpush2.msra.mxu0 0.0
    %977 = vmatprep.subr.mxu0 0.0
    %978 = vmatpush2.msra.mxu0 0.0
    %979 = vmatprep.subr.mxu0 0.0
    %980 = vmatpush2.msra.mxu0 0.0
    %981 = vmatprep.subr.mxu0 0.0
    %982 = vmatpush2.msra.mxu0 0.0
    %983 = vmatprep.subr.mxu0 0.0
    %984 = vmatpush2.msra.mxu0 0.0
    %985 = vmatprep.subr.mxu0 0.0
    %986 = vmatpush2.msra.mxu0 0.0
    %987 = vmatprep.subr.mxu0 0.0
    %988 = vmatpush2.msra.mxu0 0.0
    %989 = vmatprep.subr.mxu0 0.0
    %990 = vmatpush2.msra.mxu0 0.0
    %991 = vmatprep.subr.mxu0 0.0
    %992 = vmatpush2.msra.mxu0 0.0
    %993 = vmatprep.subr.mxu0 0.0
    %994 = vmatpush2.msra.mxu0 0.0
    %995 = vmatprep.subr.mxu0 0.0
    %996 = vmatpush2.msra.mxu0 0.0
    %997 = vmatprep.subr.mxu0 0.0
    %998 = vmatpush2.msra.mxu0 0.0
    %999 = vmatprep.mubr.f32.mxu0 0.0
    %1000 = vmatmul.mubr.f32.gmra.mxu0 %v933
    %v1001 = vpop.f32.mrf.mxu0
    %v1002 = vadd.f32 0.0, %v1001
    %v1003 = vpop.f32.mrf.mxu0
    %1004 = vdwg.mxu0
    %1005 = vrot.lane.b32.xlu0 %v133, 120
    %v1006 = vpop.permute.xlu0 %1005
    %1007 = vrot.lane.b32.xlu0 %v133, 88
    %v1008 = vpop.permute.xlu0 %1007
    %v1009 = vsel %vm141, %v1006, 0
    %v1011 = vsel %vm141, %v1008, 0
    %1013 = vmatprep.subr.mxu0 0.0
    %1014 = vmatpush1.xpose.msra.mxu0 0.0
    %1015 = vmatprep.subr.mxu0 0.0
    %1016 = vmatpush1.xpose.msra.mxu0 0.0
    %1017 = vmatprep.subr.mxu0 0.0
    %1018 = vmatpush1.xpose.msra.mxu0 0.0
    %1019 = vmatprep.subr.mxu0 0.0
    %1020 = vmatpush1.xpose.msra.mxu0 0.0
    %1021 = vmatprep.subr.mxu0 0.0
    %1022 = vmatpush1.xpose.msra.mxu0 0.0
    %1023 = vmatprep.subr.mxu0 0.0
    %1024 = vmatpush1.xpose.msra.mxu0 0.0
    %1025 = vmatprep.subr.mxu0 0.0
    %1026 = vmatpush1.xpose.msra.mxu0 0.0
    %1027 = vmatprep.subr.mxu0 0.0
    %1028 = vmatpush1.xpose.msra.mxu0 0.0
    %1029 = vmatprep.subr.mxu0 0.0
    %1030 = vmatpush1.xpose.msra.mxu0 0.0
    %1031 = vmatprep.subr.mxu0 0.0
    %1032 = vmatpush1.xpose.msra.mxu0 0.0
    %1033 = vmatprep.subr.mxu0 0.0
    %1034 = vmatpush1.xpose.msra.mxu0 0.0
    %1035 = vmatprep.subr.mxu0 0.0
    %1036 = vmatpush1.xpose.msra.mxu0 0.0
    %1037 = vmatprep.subr.mxu0 0.0
    %1038 = vmatpush1.xpose.msra.mxu0 0.0
    %1039 = vmatprep.subr.mxu0 0.0
    %1040 = vmatpush1.xpose.msra.mxu0 0.0
    %1041 = vmatprep.subr.mxu0 0.0
    %1042 = vmatpush1.xpose.msra.mxu0 0.0
    %1043 = vmatprep.subr.mxu0 0.0
    %1044 = vmatpush1.xpose.msra.mxu0 %v1011
    %1045 = vmatprep.subr.mxu0 0.0
    %1046 = vmatpush2.xpose.msra.mxu0 0.0
    %1047 = vmatprep.subr.mxu0 0.0
    %1048 = vmatpush2.xpose.msra.mxu0 0.0
    %1049 = vmatprep.subr.mxu0 0.0
    %1050 = vmatpush2.xpose.msra.mxu0 0.0
    %1051 = vmatprep.subr.mxu0 0.0
    %1052 = vmatpush2.xpose.msra.mxu0 0.0
    %1053 = vmatprep.subr.mxu0 0.0
    %1054 = vmatpush2.xpose.msra.mxu0 0.0
    %1055 = vmatprep.subr.mxu0 0.0
    %1056 = vmatpush2.xpose.msra.mxu0 0.0
    %1057 = vmatprep.subr.mxu0 0.0
    %1058 = vmatpush2.xpose.msra.mxu0 0.0
    %1059 = vmatprep.subr.mxu0 0.0
    %1060 = vmatpush2.xpose.msra.mxu0 0.0
    %1061 = vmatprep.subr.mxu0 0.0
    %1062 = vmatpush2.xpose.msra.mxu0 0.0
    %1063 = vmatprep.subr.mxu0 0.0
    %1064 = vmatpush2.xpose.msra.mxu0 0.0
    %1065 = vmatprep.subr.mxu0 0.0
    %1066 = vmatpush2.xpose.msra.mxu0 0.0
    %1067 = vmatprep.subr.mxu0 0.0
    %1068 = vmatpush2.xpose.msra.mxu0 0.0
    %1069 = vmatprep.subr.mxu0 0.0
    %1070 = vmatpush2.xpose.msra.mxu0 0.0
    %1071 = vmatprep.subr.mxu0 0.0
    %1072 = vmatpush2.xpose.msra.mxu0 0.0
    %1073 = vmatprep.subr.mxu0 0.0
    %1074 = vmatpush2.xpose.msra.mxu0 0.0
    %1075 = vmatprep.subr.mxu0 0.0
    %1076 = vmatpush2.xpose.msra.mxu0 0.0
    %1077 = vmatprep.mubr.f32.mxu0 0.0
    %1078 = vmatmul.mubr.f32.gmra.mxu0 %v1009
    %v1079 = vpop.f32.mrf.mxu0
    %v1080 = vadd.f32 0.0, %v1079
    %v1081 = vpop.f32.mrf.mxu0
    %1082 = vdwg.mxu0
    %v1083 = vmul.f32 %v1080, %v914
    %v1084 = vadd.f32 %v1083, %v830
    %v1085 = vsel %vm141, %v1084, -inf
    %1086 = vmax.xlane.f32.xlu0 %v1085
    %v1087 = vpop.xlane.xlu0 %1086
    %v1088 = vsub.f32 %v1084, %v1087
    %v1089 = vmul.f32 %v1088, 1.442695
    %v1090 = vpow.pop %v1089
    %v1091 = vsel %vm141, %v1090, 0.0
    %1092 = vadd.xlane.f32.xlu0 %v1091
    %v1093 = vpop.xlane.xlu0 %1092
    %v1094 = vrcp.pop %v1093
    %v1095 = vmul.f32 %v1090, %v1094
    %1096 = vrot.lane.b32.xlu0 %v133, 56
    %v1097 = vpop.permute.xlu0 %1096
    %v1100 = vsel %vm141, %v1095, 0
    %1102 = vmatprep.subr.mxu0 0.0
    %1103 = vmatpush1.msra.mxu0 0.0
    %1104 = vmatprep.subr.mxu0 0.0
    %1105 = vmatpush1.msra.mxu0 0.0
    %1106 = vmatprep.subr.mxu0 0.0
    %1107 = vmatpush1.msra.mxu0 0.0
    %1108 = vmatprep.subr.mxu0 0.0
    %1109 = vmatpush1.msra.mxu0 0.0
    %1110 = vmatprep.subr.mxu0 0.0
    %1111 = vmatpush1.msra.mxu0 0.0
    %1112 = vmatprep.subr.mxu0 0.0
    %1113 = vmatpush1.msra.mxu0 0.0
    %1114 = vmatprep.subr.mxu0 0.0
    %1115 = vmatpush1.msra.mxu0 0.0
    %1116 = vmatprep.subr.mxu0 0.0
    %1117 = vmatpush1.msra.mxu0 0.0
    %1118 = vmatprep.subr.mxu0 0.0
    %1119 = vmatpush1.msra.mxu0 0.0
    %1120 = vmatprep.subr.mxu0 0.0
    %1121 = vmatpush1.msra.mxu0 0.0
    %1122 = vmatprep.subr.mxu0 0.0
    %1123 = vmatpush1.msra.mxu0 0.0
    %1124 = vmatprep.subr.mxu0 0.0
    %1125 = vmatpush1.msra.mxu0 0.0
    %1126 = vmatprep.subr.mxu0 0.0
    %1127 = vmatpush1.msra.mxu0 0.0
    %1128 = vmatprep.subr.mxu0 0.0
    %1129 = vmatpush1.msra.mxu0 0.0
    %1130 = vmatprep.subr.mxu0 0.0
    %1131 = vmatpush1.msra.mxu0 0.0
    %1132 = vmatprep.subr.mxu0 0.0
    %1133 = vmatpush1.msra.mxu0 %v1097
    %1134 = vmatprep.subr.mxu0 0.0
    %1135 = vmatpush2.msra.mxu0 0.0
    %1136 = vmatprep.subr.mxu0 0.0
    %1137 = vmatpush2.msra.mxu0 0.0
    %1138 = vmatprep.subr.mxu0 0.0
    %1139 = vmatpush2.msra.mxu0 0.0
    %1140 = vmatprep.subr.mxu0 0.0
    %1141 = vmatpush2.msra.mxu0 0.0
    %1142 = vmatprep.subr.mxu0 0.0
    %1143 = vmatpush2.msra.mxu0 0.0
    %1144 = vmatprep.subr.mxu0 0.0
    %1145 = vmatpush2.msra.mxu0 0.0
    %1146 = vmatprep.subr.mxu0 0.0
    %1147 = vmatpush2.msra.mxu0 0.0
    %1148 = vmatprep.subr.mxu0 0.0
    %1149 = vmatpush2.msra.mxu0 0.0
    %1150 = vmatprep.subr.mxu0 0.0
    %1151 = vmatpush2.msra.mxu0 0.0
    %1152 = vmatprep.subr.mxu0 0.0
    %1153 = vmatpush2.msra.mxu0 0.0
    %1154 = vmatprep.subr.mxu0 0.0
    %1155 = vmatpush2.msra.mxu0 0.0
    %1156 = vmatprep.subr.mxu0 0.0
    %1157 = vmatpush2.msra.mxu0 0.0
    %1158 = vmatprep.subr.mxu0 0.0
    %1159 = vmatpush2.msra.mxu0 0.0
    %1160 = vmatprep.subr.mxu0 0.0
    %1161 = vmatpush2.msra.mxu0 0.0
    %1162 = vmatprep.subr.mxu0 0.0
    %1163 = vmatpush2.msra.mxu0 0.0
    %1164 = vmatprep.subr.mxu0 0.0
    %1165 = vmatpush2.msra.mxu0 0.0
    %1166 = vmatprep.mubr.f32.mxu0 0.0
    %1167 = vmatmul.mubr.f32.gmra.mxu0 %v1100
    %v1168 = vpop.f32.mrf.mxu0
    %v1169 = vadd.f32 0.0, %v1168
    %v1170 = vpop.f32.mrf.mxu0
    %1171 = vdwg.mxu0
    %1172 = vrot.lane.b32.xlu0 %v133, 112
    %v1173 = vpop.permute.xlu0 %1172
    %1174 = vrot.lane.b32.xlu0 %v133, 80
    %v1175 = vpop.permute.xlu0 %1174
    %v1176 = vsel %vm141, %v1173, 0
    %v1178 = vsel %vm141, %v1175, 0
    %1180 = vmatprep.subr.mxu0 0.0
    %1181 = vmatpush1.xpose.msra.mxu0 0.0
    %1182 = vmatprep.subr.mxu0 0.0
    %1183 = vmatpush1.xpose.msra.mxu0 0.0
    %1184 = vmatprep.subr.mxu0 0.0
    %1185 = vmatpush1.xpose.msra.mxu0 0.0
    %1186 = vmatprep.subr.mxu0 0.0
    %1187 = vmatpush1.xpose.msra.mxu0 0.0
    %1188 = vmatprep.subr.mxu0 0.0
    %1189 = vmatpush1.xpose.msra.mxu0 0.0
    %1190 = vmatprep.subr.mxu0 0.0
    %1191 = vmatpush1.xpose.msra.mxu0 0.0
    %1192 = vmatprep.subr.mxu0 0.0
    %1193 = vmatpush1.xpose.msra.mxu0 0.0
    %1194 = vmatprep.subr.mxu0 0.0
    %1195 = vmatpush1.xpose.msra.mxu0 0.0
    %1196 = vmatprep.subr.mxu0 0.0
    %1197 = vmatpush1.xpose.msra.mxu0 0.0
    %1198 = vmatprep.subr.mxu0 0.0
    %1199 = vmatpush1.xpose.msra.mxu0 0.0
    %1200 = vmatprep.subr.mxu0 0.0
    %1201 = vmatpush1.xpose.msra.mxu0 0.0
    %1202 = vmatprep.subr.mxu0 0.0
    %1203 = vmatpush1.xpose.msra.mxu0 0.0
    %1204 = vmatprep.subr.mxu0 0.0
    %1205 = vmatpush1.xpose.msra.mxu0 0.0
    %1206 = vmatprep.subr.mxu0 0.0
    %1207 = vmatpush1.xpose.msra.mxu0 0.0
    %1208 = vmatprep.subr.mxu0 0.0
    %1209 = vmatpush1.xpose.msra.mxu0 0.0
    %1210 = vmatprep.subr.mxu0 0.0
    %1211 = vmatpush1.xpose.msra.mxu0 %v1178
    %1212 = vmatprep.subr.mxu0 0.0
    %1213 = vmatpush2.xpose.msra.mxu0 0.0
    %1214 = vmatprep.subr.mxu0 0.0
    %1215 = vmatpush2.xpose.msra.mxu0 0.0
    %1216 = vmatprep.subr.mxu0 0.0
    %1217 = vmatpush2.xpose.msra.mxu0 0.0
    %1218 = vmatprep.subr.mxu0 0.0
    %1219 = vmatpush2.xpose.msra.mxu0 0.0
    %1220 = vmatprep.subr.mxu0 0.0
    %1221 = vmatpush2.xpose.msra.mxu0 0.0
    %1222 = vmatprep.subr.mxu0 0.0
    %1223 = vmatpush2.xpose.msra.mxu0 0.0
    %1224 = vmatprep.subr.mxu0 0.0
    %1225 = vmatpush2.xpose.msra.mxu0 0.0
    %1226 = vmatprep.subr.mxu0 0.0
    %1227 = vmatpush2.xpose.msra.mxu0 0.0
    %1228 = vmatprep.subr.mxu0 0.0
    %1229 = vmatpush2.xpose.msra.mxu0 0.0
    %1230 = vmatprep.subr.mxu0 0.0
    %1231 = vmatpush2.xpose.msra.mxu0 0.0
    %1232 = vmatprep.subr.mxu0 0.0
    %1233 = vmatpush2.xpose.msra.mxu0 0.0
    %1234 = vmatprep.subr.mxu0 0.0
    %1235 = vmatpush2.xpose.msra.mxu0 0.0
    %1236 = vmatprep.subr.mxu0 0.0
    %1237 = vmatpush2.xpose.msra.mxu0 0.0
    %1238 = vmatprep.subr.mxu0 0.0
    %1239 = vmatpush2.xpose.msra.mxu0 0.0
    %1240 = vmatprep.subr.mxu0 0.0
    %1241 = vmatpush2.xpose.msra.mxu0 0.0
    %1242 = vmatprep.subr.mxu0 0.0
    %1243 = vmatpush2.xpose.msra.mxu0 0.0
    %1244 = vmatprep.mubr.f32.mxu0 0.0
    %1245 = vmatmul.mubr.f32.gmra.mxu0 %v1176
    %v1246 = vpop.f32.mrf.mxu0
    %v1247 = vadd.f32 0.0, %v1246
    %v1248 = vpop.f32.mrf.mxu0
    %1249 = vdwg.mxu0
    %v1250 = vmul.f32 %v1247, %v914
    %v1251 = vadd.f32 %v1250, %v830
    %v1252 = vsel %vm141, %v1251, -inf
    %1253 = vmax.xlane.f32.xlu0 %v1252
    %v1254 = vpop.xlane.xlu0 %1253
    %v1255 = vsub.f32 %v1251, %v1254
    %v1256 = vmul.f32 %v1255, 1.442695
    %v1257 = vpow.pop %v1256
    %v1258 = vsel %vm141, %v1257, 0.0
    %1259 = vadd.xlane.f32.xlu0 %v1258
    %v1260 = vpop.xlane.xlu0 %1259
    %v1261 = vrcp.pop %v1260
    %v1262 = vmul.f32 %v1257, %v1261
    %1263 = vrot.lane.b32.xlu0 %v133, 48
    %v1264 = vpop.permute.xlu0 %1263
    %v1267 = vsel %vm141, %v1262, 0
    %1269 = vmatprep.subr.mxu0 0.0
    %1270 = vmatpush1.msra.mxu0 0.0
    %1271 = vmatprep.subr.mxu0 0.0
    %1272 = vmatpush1.msra.mxu0 0.0
    %1273 = vmatprep.subr.mxu0 0.0
    %1274 = vmatpush1.msra.mxu0 0.0
    %1275 = vmatprep.subr.mxu0 0.0
    %1276 = vmatpush1.msra.mxu0 0.0
    %1277 = vmatprep.subr.mxu0 0.0
    %1278 = vmatpush1.msra.mxu0 0.0
    %1279 = vmatprep.subr.mxu0 0.0
    %1280 = vmatpush1.msra.mxu0 0.0
    %1281 = vmatprep.subr.mxu0 0.0
    %1282 = vmatpush1.msra.mxu0 0.0
    %1283 = vmatprep.subr.mxu0 0.0
    %1284 = vmatpush1.msra.mxu0 0.0
    %1285 = vmatprep.subr.mxu0 0.0
    %1286 = vmatpush1.msra.mxu0 0.0
    %1287 = vmatprep.subr.mxu0 0.0
    %1288 = vmatpush1.msra.mxu0 0.0
    %1289 = vmatprep.subr.mxu0 0.0
    %1290 = vmatpush1.msra.mxu0 0.0
    %1291 = vmatprep.subr.mxu0 0.0
    %1292 = vmatpush1.msra.mxu0 0.0
    %1293 = vmatprep.subr.mxu0 0.0
    %1294 = vmatpush1.msra.mxu0 0.0
    %1295 = vmatprep.subr.mxu0 0.0
    %1296 = vmatpush1.msra.mxu0 0.0
    %1297 = vmatprep.subr.mxu0 0.0
    %1298 = vmatpush1.msra.mxu0 0.0
    %1299 = vmatprep.subr.mxu0 0.0
    %1300 = vmatpush1.msra.mxu0 %v1264
    %1301 = vmatprep.subr.mxu0 0.0
    %1302 = vmatpush2.msra.mxu0 0.0
    %1303 = vmatprep.subr.mxu0 0.0
    %1304 = vmatpush2.msra.mxu0 0.0
    %1305 = vmatprep.subr.mxu0 0.0
    %1306 = vmatpush2.msra.mxu0 0.0
    %1307 = vmatprep.subr.mxu0 0.0
    %1308 = vmatpush2.msra.mxu0 0.0
    %1309 = vmatprep.subr.mxu0 0.0
    %1310 = vmatpush2.msra.mxu0 0.0
    %1311 = vmatprep.subr.mxu0 0.0
    %1312 = vmatpush2.msra.mxu0 0.0
    %1313 = vmatprep.subr.mxu0 0.0
    %1314 = vmatpush2.msra.mxu0 0.0
    %1315 = vmatprep.subr.mxu0 0.0
    %1316 = vmatpush2.msra.mxu0 0.0
    %1317 = vmatprep.subr.mxu0 0.0
    %1318 = vmatpush2.msra.mxu0 0.0
    %1319 = vmatprep.subr.mxu0 0.0
    %1320 = vmatpush2.msra.mxu0 0.0
    %1321 = vmatprep.subr.mxu0 0.0
    %1322 = vmatpush2.msra.mxu0 0.0
    %1323 = vmatprep.subr.mxu0 0.0
    %1324 = vmatpush2.msra.mxu0 0.0
    %1325 = vmatprep.subr.mxu0 0.0
    %1326 = vmatpush2.msra.mxu0 0.0
    %1327 = vmatprep.subr.mxu0 0.0
    %1328 = vmatpush2.msra.mxu0 0.0
    %1329 = vmatprep.subr.mxu0 0.0
    %1330 = vmatpush2.msra.mxu0 0.0
    %1331 = vmatprep.subr.mxu0 0.0
    %1332 = vmatpush2.msra.mxu0 0.0
    %1333 = vmatprep.mubr.f32.mxu0 0.0
    %1334 = vmatmul.mubr.f32.gmra.mxu0 %v1267
    %v1335 = vpop.f32.mrf.mxu0
    %v1336 = vadd.f32 0.0, %v1335
    %v1337 = vpop.f32.mrf.mxu0
    %1338 = vdwg.mxu0
    %1339 = vrot.lane.b32.xlu0 %v133, 104
    %v1340 = vpop.permute.xlu0 %1339
    %1341 = vrot.lane.b32.xlu0 %v133, 72
    %v1342 = vpop.permute.xlu0 %1341
    %v1343 = vsel %vm141, %v1340, 0
    %v1345 = vsel %vm141, %v1342, 0
    %1347 = vmatprep.subr.mxu0 0.0
    %1348 = vmatpush1.xpose.msra.mxu0 0.0
    %1349 = vmatprep.subr.mxu0 0.0
    %1350 = vmatpush1.xpose.msra.mxu0 0.0
    %1351 = vmatprep.subr.mxu0 0.0
    %1352 = vmatpush1.xpose.msra.mxu0 0.0
    %1353 = vmatprep.subr.mxu0 0.0
    %1354 = vmatpush1.xpose.msra.mxu0 0.0
    %1355 = vmatprep.subr.mxu0 0.0
    %1356 = vmatpush1.xpose.msra.mxu0 0.0
    %1357 = vmatprep.subr.mxu0 0.0
    %1358 = vmatpush1.xpose.msra.mxu0 0.0
    %1359 = vmatprep.subr.mxu0 0.0
    %1360 = vmatpush1.xpose.msra.mxu0 0.0
    %1361 = vmatprep.subr.mxu0 0.0
    %1362 = vmatpush1.xpose.msra.mxu0 0.0
    %1363 = vmatprep.subr.mxu0 0.0
    %1364 = vmatpush1.xpose.msra.mxu0 0.0
    %1365 = vmatprep.subr.mxu0 0.0
    %1366 = vmatpush1.xpose.msra.mxu0 0.0
    %1367 = vmatprep.subr.mxu0 0.0
    %1368 = vmatpush1.xpose.msra.mxu0 0.0
    %1369 = vmatprep.subr.mxu0 0.0
    %1370 = vmatpush1.xpose.msra.mxu0 0.0
    %1371 = vmatprep.subr.mxu0 0.0
    %1372 = vmatpush1.xpose.msra.mxu0 0.0
    %1373 = vmatprep.subr.mxu0 0.0
    %1374 = vmatpush1.xpose.msra.mxu0 0.0
    %1375 = vmatprep.subr.mxu0 0.0
    %1376 = vmatpush1.xpose.msra.mxu0 0.0
    %1377 = vmatprep.subr.mxu0 0.0
    %1378 = vmatpush1.xpose.msra.mxu0 %v1345
    %1379 = vmatprep.subr.mxu0 0.0
    %1380 = vmatpush2.xpose.msra.mxu0 0.0
    %1381 = vmatprep.subr.mxu0 0.0
    %1382 = vmatpush2.xpose.msra.mxu0 0.0
    %1383 = vmatprep.subr.mxu0 0.0
    %1384 = vmatpush2.xpose.msra.mxu0 0.0
    %1385 = vmatprep.subr.mxu0 0.0
    %1386 = vmatpush2.xpose.msra.mxu0 0.0
    %1387 = vmatprep.subr.mxu0 0.0
    %1388 = vmatpush2.xpose.msra.mxu0 0.0
    %1389 = vmatprep.subr.mxu0 0.0
    %1390 = vmatpush2.xpose.msra.mxu0 0.0
    %1391 = vmatprep.subr.mxu0 0.0
    %1392 = vmatpush2.xpose.msra.mxu0 0.0
    %1393 = vmatprep.subr.mxu0 0.0
    %1394 = vmatpush2.xpose.msra.mxu0 0.0
    %1395 = vmatprep.subr.mxu0 0.0
    %1396 = vmatpush2.xpose.msra.mxu0 0.0
    %1397 = vmatprep.subr.mxu0 0.0
    %1398 = vmatpush2.xpose.msra.mxu0 0.0
    %1399 = vmatprep.subr.mxu0 0.0
    %1400 = vmatpush2.xpose.msra.mxu0 0.0
    %1401 = vmatprep.subr.mxu0 0.0
    %1402 = vmatpush2.xpose.msra.mxu0 0.0
    %1403 = vmatprep.subr.mxu0 0.0
    %1404 = vmatpush2.xpose.msra.mxu0 0.0
    %1405 = vmatprep.subr.mxu0 0.0
    %1406 = vmatpush2.xpose.msra.mxu0 0.0
    %1407 = vmatprep.subr.mxu0 0.0
    %1408 = vmatpush2.xpose.msra.mxu0 0.0
    %1409 = vmatprep.subr.mxu0 0.0
    %1410 = vmatpush2.xpose.msra.mxu0 0.0
    %1411 = vmatprep.mubr.f32.mxu0 0.0
    %1412 = vmatmul.mubr.f32.gmra.mxu0 %v1343
    %v1413 = vpop.f32.mrf.mxu0
    %v1414 = vadd.f32 0.0, %v1413
    %v1415 = vpop.f32.mrf.mxu0
    %1416 = vdwg.mxu0
    %v1417 = vmul.f32 %v1414, %v914
    %v1418 = vadd.f32 %v1417, %v830
    %v1419 = vsel %vm141, %v1418, -inf
    %1420 = vmax.xlane.f32.xlu0 %v1419
    %v1421 = vpop.xlane.xlu0 %1420
    %v1422 = vsub.f32 %v1418, %v1421
    %v1423 = vmul.f32 %v1422, 1.442695
    %v1424 = vpow.pop %v1423
    %v1425 = vsel %vm141, %v1424, 0.0
    %1426 = vadd.xlane.f32.xlu0 %v1425
    %v1427 = vpop.xlane.xlu0 %1426
    %v1428 = vrcp.pop %v1427
    %v1429 = vmul.f32 %v1424, %v1428
    %1430 = vrot.lane.b32.xlu0 %v133, 40
    %v1431 = vpop.permute.xlu0 %1430
    %v1434 = vsel %vm141, %v1429, 0
    %1436 = vmatprep.subr.mxu0 0.0
    %1437 = vmatpush1.msra.mxu0 0.0
    %1438 = vmatprep.subr.mxu0 0.0
    %1439 = vmatpush1.msra.mxu0 0.0
    %1440 = vmatprep.subr.mxu0 0.0
    %1441 = vmatpush1.msra.mxu0 0.0
    %1442 = vmatprep.subr.mxu0 0.0
    %1443 = vmatpush1.msra.mxu0 0.0
    %1444 = vmatprep.subr.mxu0 0.0
    %1445 = vmatpush1.msra.mxu0 0.0
    %1446 = vmatprep.subr.mxu0 0.0
    %1447 = vmatpush1.msra.mxu0 0.0
    %1448 = vmatprep.subr.mxu0 0.0
    %1449 = vmatpush1.msra.mxu0 0.0
    %1450 = vmatprep.subr.mxu0 0.0
    %1451 = vmatpush1.msra.mxu0 0.0
    %1452 = vmatprep.subr.mxu0 0.0
    %1453 = vmatpush1.msra.mxu0 0.0
    %1454 = vmatprep.subr.mxu0 0.0
    %1455 = vmatpush1.msra.mxu0 0.0
    %1456 = vmatprep.subr.mxu0 0.0
    %1457 = vmatpush1.msra.mxu0 0.0
    %1458 = vmatprep.subr.mxu0 0.0
    %1459 = vmatpush1.msra.mxu0 0.0
    %1460 = vmatprep.subr.mxu0 0.0
    %1461 = vmatpush1.msra.mxu0 0.0
    %1462 = vmatprep.subr.mxu0 0.0
    %1463 = vmatpush1.msra.mxu0 0.0
    %1464 = vmatprep.subr.mxu0 0.0
    %1465 = vmatpush1.msra.mxu0 0.0
    %1466 = vmatprep.subr.mxu0 0.0
    %1467 = vmatpush1.msra.mxu0 %v1431
    %1468 = vmatprep.subr.mxu0 0.0
    %1469 = vmatpush2.msra.mxu0 0.0
    %1470 = vmatprep.subr.mxu0 0.0
    %1471 = vmatpush2.msra.mxu0 0.0
    %1472 = vmatprep.subr.mxu0 0.0
    %1473 = vmatpush2.msra.mxu0 0.0
    %1474 = vmatprep.subr.mxu0 0.0
    %1475 = vmatpush2.msra.mxu0 0.0
    %1476 = vmatprep.subr.mxu0 0.0
    %1477 = vmatpush2.msra.mxu0 0.0
    %1478 = vmatprep.subr.mxu0 0.0
    %1479 = vmatpush2.msra.mxu0 0.0
    %1480 = vmatprep.subr.mxu0 0.0
    %1481 = vmatpush2.msra.mxu0 0.0
    %1482 = vmatprep.subr.mxu0 0.0
    %1483 = vmatpush2.msra.mxu0 0.0
    %1484 = vmatprep.subr.mxu0 0.0
    %1485 = vmatpush2.msra.mxu0 0.0
    %1486 = vmatprep.subr.mxu0 0.0
    %1487 = vmatpush2.msra.mxu0 0.0
    %1488 = vmatprep.subr.mxu0 0.0
    %1489 = vmatpush2.msra.mxu0 0.0
    %1490 = vmatprep.subr.mxu0 0.0
    %1491 = vmatpush2.msra.mxu0 0.0
    %1492 = vmatprep.subr.mxu0 0.0
    %1493 = vmatpush2.msra.mxu0 0.0
    %1494 = vmatprep.subr.mxu0 0.0
    %1495 = vmatpush2.msra.mxu0 0.0
    %1496 = vmatprep.subr.mxu0 0.0
    %1497 = vmatpush2.msra.mxu0 0.0
    %1498 = vmatprep.subr.mxu0 0.0
    %1499 = vmatpush2.msra.mxu0 0.0
    %1500 = vmatprep.mubr.f32.mxu0 0.0
    %1501 = vmatmul.mubr.f32.gmra.mxu0 %v1434
    %v1502 = vpop.f32.mrf.mxu0
    %v1503 = vadd.f32 0.0, %v1502
    %v1504 = vpop.f32.mrf.mxu0
    %1505 = vdwg.mxu0
    %1507 = vrot.lane.b32.xlu0 %v1169, 8
    %v1508 = vpop.permute.xlu0 %1507
    %1511 = vrot.lane.b32.xlu0 %v1336, 16
    %v1512 = vpop.permute.xlu0 %1511
    %1515 = vrot.lane.b32.xlu0 %v1503, 24
    %v1516 = vpop.permute.xlu0 %1515
    %v1518 = vsel %vm141, %v1002, %v1508
    %v1519 = vsel %vm825, %v1518, %v1512
    %v1520 = vsel %vm827, %v1519, %v1516
    %v1521 = vld [vmem:[#allocation2] sm:$0xff]
    %v1522 = vld [vmem:[#allocation2 + $0x8] sm:$0xff]
    %v1523 = vld [vmem:[#allocation2 + $0x10] sm:$0xff]
    %v1524 = vld [vmem:[#allocation2 + $0x18] sm:$0xff]
    %v1525 = vld [vmem:[%s6] sm:$0x1]
    %v1527 = vlaneseq
    %v1528 = vshrl.u32 %v1527, 7
    %v1529 = vsub.s32 0, %v1528
    %v1530 = vrot.slane %v1525, %v1529
    %v1533 = vsel %vm54, %v828, 0
    %v1536 = vsel %vm54, %v1520, 0
    %1538 = vmatprep.subr.mxu0 0.0
    %1539 = vmatpush1.msra.mxu0 0.0
    %1540 = vmatprep.subr.mxu0 0.0
    %1541 = vmatpush1.msra.mxu0 0.0
    %1542 = vmatprep.subr.mxu0 0.0
    %1543 = vmatpush1.msra.mxu0 0.0
    %1544 = vmatprep.subr.mxu0 0.0
    %1545 = vmatpush1.msra.mxu0 0.0
    %1546 = vmatprep.subr.mxu0 0.0
    %1547 = vmatpush1.msra.mxu0 0.0
    %1548 = vmatprep.subr.mxu0 0.0
    %1549 = vmatpush1.msra.mxu0 0.0
    %1550 = vmatprep.subr.mxu0 0.0
    %1551 = vmatpush1.msra.mxu0 0.0
    %1552 = vmatprep.subr.mxu0 0.0
    %1553 = vmatpush1.msra.mxu0 0.0
    %1554 = vmatprep.subr.mxu0 0.0
    %1555 = vmatpush1.msra.mxu0 0.0
    %1556 = vmatprep.subr.mxu0 0.0
    %1557 = vmatpush1.msra.mxu0 0.0
    %1558 = vmatprep.subr.mxu0 0.0
    %1559 = vmatpush1.msra.mxu0 0.0
    %1560 = vmatprep.subr.mxu0 0.0
    %1561 = vmatpush1.msra.mxu0 0.0
    %1562 = vmatprep.subr.mxu0 0.0
    %1563 = vmatpush1.msra.mxu0 %v1524
    %1564 = vmatprep.subr.mxu0 0.0
    %1565 = vmatpush1.msra.mxu0 %v1523
    %1566 = vmatprep.subr.mxu0 0.0
    %1567 = vmatpush1.msra.mxu0 %v1522
    %1568 = vmatprep.subr.mxu0 0.0
    %1569 = vmatpush1.msra.mxu0 %v1521
    %1570 = vmatprep.subr.mxu0 0.0
    %1571 = vmatpush2.msra.mxu0 0.0
    %1572 = vmatprep.subr.mxu0 0.0
    %1573 = vmatpush2.msra.mxu0 0.0
    %1574 = vmatprep.subr.mxu0 0.0
    %1575 = vmatpush2.msra.mxu0 0.0
    %1576 = vmatprep.subr.mxu0 0.0
    %1577 = vmatpush2.msra.mxu0 0.0
    %1578 = vmatprep.subr.mxu0 0.0
    %1579 = vmatpush2.msra.mxu0 0.0
    %1580 = vmatprep.subr.mxu0 0.0
    %1581 = vmatpush2.msra.mxu0 0.0
    %1582 = vmatprep.subr.mxu0 0.0
    %1583 = vmatpush2.msra.mxu0 0.0
    %1584 = vmatprep.subr.mxu0 0.0
    %1585 = vmatpush2.msra.mxu0 0.0
    %1586 = vmatprep.subr.mxu0 0.0
    %1587 = vmatpush2.msra.mxu0 0.0
    %1588 = vmatprep.subr.mxu0 0.0
    %1589 = vmatpush2.msra.mxu0 0.0
    %1590 = vmatprep.subr.mxu0 0.0
    %1591 = vmatpush2.msra.mxu0 0.0
    %1592 = vmatprep.subr.mxu0 0.0
    %1593 = vmatpush2.msra.mxu0 0.0
    %1594 = vmatprep.subr.mxu0 0.0
    %1595 = vmatpush2.msra.mxu0 0.0
    %1596 = vmatprep.subr.mxu0 0.0
    %1597 = vmatpush2.msra.mxu0 0.0
    %1598 = vmatprep.subr.mxu0 0.0
    %1599 = vmatpush2.msra.mxu0 0.0
    %1600 = vmatprep.subr.mxu0 0.0
    %1601 = vmatpush2.msra.mxu0 0.0
    %1602 = vmatprep.mubr.f32.mxu0 0.0
    %1603 = vmatmul.mubr.f32.gmra.mxu0 %v1533
    %v1604 = vpop.f32.mrf.mxu0
    %v1605 = vadd.f32 %v1530, %v1604
    %v1606 = vpop.f32.mrf.mxu0
    %1607 = vmatprep.mubr.f32.mxu0 0.0
    %1608 = vmatmul.mubr.f32.gmra.mxu0 %v1536
    %v1609 = vpop.f32.mrf.mxu0
    %v1610 = vadd.f32 %v1530, %v1609
    %v1611 = vpop.f32.mrf.mxu0
    %1612 = vdwg.mxu0
    %1613 = vst.msk [vmem:[#allocation5] sm:$0xff] %vm54, %v1605
    %1614 = vst.msk [vmem:[#allocation5 + $0x8] sm:$0xff] %vm54, %v1610
    // Predicated region
    $region34: #{_forward_jit.1} parent=1 // pred_check
      _
    $region35: #{_forward_jit.1} parent=1 // pred_check_branch
      %1616 = sbr.rel (0) target = $region37
    $region36: #{_forward_jit.1} parent=1 // pred_region
      %s1618 = ssub.s32 256, 256
      %1619 = vsyncadd [#allocation4], %s1618
      %s1620 = sshll.u32 [#allocation5], 4
      %s1621 = int_to_ptr.vmem [resolvable:$true] %s1620
      %1626 = dma.vmem_to_hbm [thread:$0]  %s1621, 256, %s7, [#allocation4], 128, 128, 8
    $region37: #{_forward_jit.1} parent=1 // pred_fallthru
      _
    // Predicated region
    $region38: #{_forward_jit.1} parent=1 // pred_check
      _
    $region39: #{_forward_jit.1} parent=1 // pred_check_branch
      %1628 = sbr.rel (0) target = $region41
    $region40: #{_forward_jit.1} parent=1 // pred_region
      %1629 = dma.done [#allocation4], 256
    $region41: #{_forward_jit.1} parent=1 // pred_fallthru
      _
    %1630 = vsyncpa [#allocation3], 1
    %1631 = vsyncpa [#allocation4], 1

</llo_original>
